<compile_context>
chip_gen: v5e
topology: v5e:2x2
jax: 0.10.0
libtpu: 0.0.40
codegen_flags: <defaults>
</compile_context>

<pallas_src>
import functools

import jax
import jax.numpy as jnp
from jax.experimental import pallas as pl
from jax.experimental.pallas import tpu as pltpu

IMG = 14            # RUCell hard-codes a 14x14 knowledge base
OUT_DIM = 28        # OutputCell default out_dim
LANE = 128          # lane-dense padded width for weight/vector slabs & output

# per-step rows of the vector slab (order must match pack_params)
J_BSTEP, J_BCQ, J_WCA, J_BMTRF, J_WATTN, J_BMRI, J_WGATE = range(7)


def _softmax_last(x):
    """Softmax over the last axis with the divide on the EUP (approx recip)."""
    m = jnp.max(x, axis=-1, keepdims=True)
    e = jnp.exp(x - m)
    s = jnp.sum(e, axis=-1, keepdims=True)
    return e * pl.reciprocal(s, approx=True)


def mac_kernel(R, D, qw_ref, kb_ref, ctx_ref, w_ref, v_ref, out_ref):
    f32 = jnp.float32
    qw = qw_ref[...]                 # (B, 2D)
    kb = kb_ref[...]                 # (B, D, P) channels-major, P on lanes
    ctx = ctx_ref[...]               # (B, S, D)
    V = v_ref[...]                   # (5 + 7R, 128) vector/bias slab
    B = qw.shape[0]
    step_rows = 4 * D                # rows of weight slab per recurrence step
    srow = 4 + 7 * R                 # scalar row of the vector slab

    def vstep(i, j):                 # per-step (D,) vector
        return V[4 + 7 * i + j, 0:D]

    ctrl = jnp.broadcast_to(V[0, 0:D], (B, D))      # initial_control
    mem = jnp.broadcast_to(V[1, 0:D], (B, D))       # initial_mem

    # Hoisted, lane-dense question transform for all R steps: (B, 128),
    # real columns [0, R*D).
    qw_loc_all = jnp.dot(qw, w_ref[pl.ds(0, 2 * D), :],
                         preferred_element_type=f32)

    for i in range(R):                               # static unroll over steps
        base = 2 * D + i * step_rows

        # ---------------- CU cell ----------------
        qw_loc = qw_loc_all[:, i * D:(i + 1) * D] + vstep(i, J_BSTEP)
        # Fused GEMM #1: [ctrl; qw_loc; mem] @ [W_cq_c | W_cq_q | W_mtrf]
        x = jnp.concatenate([ctrl, qw_loc, mem], axis=0)          # (3B, D)
        y = jnp.dot(x, w_ref[pl.ds(base, D), :],
                    preferred_element_type=f32)                   # (3B, 128)
        cq = y[0:B, 0:D] + y[B:2 * B, D:2 * D] + vstep(i, J_BCQ)
        mem_trf = y[2 * B:3 * B, 2 * D:3 * D] + vstep(i, J_BMTRF)

        # ca[b,s] = <cq[b]*w_ca, ctx[b,s]>;  ca_lin bias cancels in softmax.
        ca = jnp.sum((cq * vstep(i, J_WCA))[:, None, :] * ctx, axis=-1)  # (B,S)
        cv = _softmax_last(ca)
        ctrl = jnp.sum(cv[:, :, None] * ctx, axis=1)                     # (B,D)

        # ---------------- RU cell (attention chain folded) ----------------
        # Fused GEMM #2: u @ [W_clin1^T | W_clin2^T]
        u = ctrl * vstep(i, J_WATTN)
        v12 = jnp.dot(u, w_ref[pl.ds(base + D, D), :],
                      preferred_element_type=f32)                 # (B, 128)
        att_vec = mem_trf * v12[:, 0:D] + v12[:, D:2 * D]         # (B, D)
        # b_clin / b_attn contributions are constant over p -> cancel in softmax.
        att = jnp.sum(att_vec[:, :, None] * kb, axis=1)           # (B, P)
        attw = _softmax_last(att)
        ri = jnp.sum(attw[:, None, :] * kb, axis=2)               # (B, D)

        # ---------- WU cell (gate_mem=True, no prev_control) ----------
        # Fused GEMM #3: [ri | mem] @ W_mri
        rm = jnp.concatenate([ri, mem], axis=-1)                  # (B, 2D)
        m_info = jnp.dot(rm, w_ref[pl.ds(base + 2 * D, 2 * D), :],
                         preferred_element_type=f32)[:, 0:D] + vstep(i, J_BMRI)
        gate = jax.nn.sigmoid(
            jnp.sum(ctrl * vstep(i, J_WGATE), axis=-1, keepdims=True)
            + V[srow, 1 + i:2 + i])                               # + b_gate[i]
        mem = mem * gate + m_info * (1.0 - gate)

    # ---- Output cell: lane-dense padded, unmasked 128-wide stores ----
    obase = 2 * D + R * step_rows
    h = jnp.concatenate([qw, mem], axis=-1)                       # (B, 3D)
    z = jnp.dot(h, w_ref[pl.ds(obase, 3 * D), :],
                preferred_element_type=f32) + V[2, :]             # + b_o1 (padded)
    alpha = V[srow, 0:1]                                          # PReLU alpha
    z = jnp.where(z >= 0.0, z, alpha * z)
    out_ref[...] = (jnp.dot(z, w_ref[pl.ds(obase + 3 * D, LANE), :],
                            preferred_element_type=f32)
                    + V[3, :])                                    # + b_o2 (padded)


def init_params(R, D, key):
    ks = jax.random.split(key, 32)

    def rnd(k, shape, scale=0.1):
        return (scale * jax.random.normal(k, shape)).astype(jnp.float32)

    p = {}
    p["c0"] = rnd(ks[0], (1, D))                 # initial_control
    p["m0"] = rnd(ks[1], (1, D))                 # initial_mem
    # per-step weights, (in, out) layout, stacked along a leading R axis
    p["w_step"] = rnd(ks[2], (R, 2 * D, D))      # CUCell.step_trf[i] of cell i
    p["b_step"] = rnd(ks[3], (R, D))
    p["w_cq"] = rnd(ks[4], (R, 2 * D, D))        # CUCell.cq_lin
    p["b_cq"] = rnd(ks[5], (R, D))
    p["w_ca"] = rnd(ks[6], (R, D))               # CUCell.ca_lin (out_dim = 1)
    p["b_ca"] = rnd(ks[7], (R, 1))
    p["w_mtrf"] = rnd(ks[8], (R, D, D))          # RUCell.mem_trf
    p["b_mtrf"] = rnd(ks[9], (R, D))
    p["w_clin"] = rnd(ks[10], (R, 2 * D, D))     # RUCell.ctrl_lin
    p["b_clin"] = rnd(ks[11], (R, D))
    p["w_attn"] = rnd(ks[12], (R, D))            # RUCell.attn (out_dim = 1)
    p["b_attn"] = rnd(ks[13], (R, 1))
    p["w_mri"] = rnd(ks[14], (R, 2 * D, D))      # WUCell.mem_read_int
    p["b_mri"] = rnd(ks[15], (R, D))
    p["w_gate"] = rnd(ks[16], (R, D))            # WUCell.mem_gate (out_dim = 1)
    p["b_gate"] = rnd(ks[17], (R, 1))
    # output cell
    p["w_o1"] = rnd(ks[18], (3 * D, D))
    p["b_o1"] = rnd(ks[19], (1, D))
    p["prelu"] = jnp.full((1, 1), 0.25, jnp.float32)   # torch.nn.PReLU default
    p["w_o2"] = rnd(ks[20], (D, OUT_DIM))
    p["b_o2"] = rnd(ks[21], (1, OUT_DIM))
    return p


def pack_params(params, R, D):
    """Pack all parameters into two lane-dense (rows, 128) VMEM slabs."""
    assert 3 * D <= LANE and 2 * D <= LANE
    step_rows = 4 * D
    obase = 2 * D + R * step_rows
    n_rows = obase + 3 * D + LANE

    W = jnp.zeros((n_rows, LANE), jnp.float32)
    # hoisted question transform (2D, R*D), lane-padded to 128
    w_qw_all = jnp.transpose(params["w_step"], (1, 0, 2)).reshape(2 * D, R * D)
    W = W.at[0:2 * D, 0:R * D].set(w_qw_all)
    for i in range(R):
        base = 2 * D + i * step_rows
        # RHS #1: [W_cq_c | W_cq_q | W_mtrf]
        W = W.at[base:base + D, 0:D].set(params["w_cq"][i, :D, :])
        W = W.at[base:base + D, D:2 * D].set(params["w_cq"][i, D:, :])
        W = W.at[base:base + D, 2 * D:3 * D].set(params["w_mtrf"][i])
        # RHS #2: folded ctrl_lin [W_clin1^T | W_clin2^T]
        W = W.at[base + D:base + 2 * D, 0:D].set(params["w_clin"][i, :D, :].T)
        W = W.at[base + D:base + 2 * D, D:2 * D].set(params["w_clin"][i, D:, :].T)
        # RHS #3: mem_read_int (2D, D)
        W = W.at[base + 2 * D:base + 4 * D, 0:D].set(params["w_mri"][i])
    # output layers
    W = W.at[obase:obase + 3 * D, 0:D].set(params["w_o1"])
    W = W.at[obase + 3 * D:obase + 4 * D, 0:OUT_DIM].set(params["w_o2"])

    n_v = 5 + 7 * R
    V = jnp.zeros((n_v, LANE), jnp.float32)
    V = V.at[0, 0:D].set(params["c0"][0])
    V = V.at[1, 0:D].set(params["m0"][0])
    V = V.at[2, 0:D].set(params["b_o1"][0])
    V = V.at[3, 0:OUT_DIM].set(params["b_o2"][0])
    step_vecs = jnp.stack([params["b_step"], params["b_cq"], params["w_ca"],
                           params["b_mtrf"], params["w_attn"], params["b_mri"],
                           params["w_gate"]], axis=1).reshape(7 * R, D)
    V = V.at[4:4 + 7 * R, 0:D].set(step_vecs)
    srow = 4 + 7 * R
    V = V.at[srow, 0].set(params["prelu"][0, 0])         # PReLU alpha
    V = V.at[srow, 1:1 + R].set(params["b_gate"][:, 0])  # per-step gate biases
    return W, V


@functools.partial(jax.jit, static_argnames=("R", "D", "b_tile"))
def mac_forward(params, question_words, image_vec, context_words, R, D,
                b_tile=None):
    B = question_words.shape[0]
    S = context_words.shape[1]
    P = IMG * IMG
    if b_tile is None:
        b_tile = B          # single grid step; set b_tile=cdiv(B,2) on v7x
    # channels-major knowledge base (B, D, P): free reshape of the NCHW input,
    # puts the large P axis on lanes (lane-dense VMEM layout).
    kb_t = image_vec.reshape(B, D, P)
    W, V = pack_params(params, R, D)

    kernel = functools.partial(mac_kernel, R, D)
    out = pl.pallas_call(
        kernel,
        out_shape=jax.ShapeDtypeStruct((B, LANE), jnp.float32),
        grid=(pl.cdiv(B, b_tile),),
        in_specs=[
            pl.BlockSpec((b_tile, 2 * D), lambda b: (b, 0)),     # question words
            pl.BlockSpec((b_tile, D, P), lambda b: (b, 0, 0)),   # knowledge base
            pl.BlockSpec((b_tile, S, D), lambda b: (b, 0, 0)),   # context words
            pl.BlockSpec(W.shape, lambda b: (0, 0)),             # weight slab
            pl.BlockSpec(V.shape, lambda b: (0, 0)),             # vector slab
        ],
        out_specs=pl.BlockSpec((b_tile, LANE), lambda b: (b, 0)),
        compiler_params=pltpu.CompilerParams(
            dimension_semantics=("parallel",)),
    )(question_words, kb_t, context_words, W, V)
    return out[:, :OUT_DIM]


def mac_reference(params, question_words, image_vec, context_words, R, D):
    """Pure-JAX reference with the original (unfused) PyTorch semantics."""
    B = question_words.shape[0]
    kb = jnp.transpose(image_vec, (0, 2, 3, 1)).reshape(B, IMG * IMG, D)
    qw, ctx = question_words, context_words
    ctrl = jnp.broadcast_to(params["c0"], (B, D))
    mem = jnp.broadcast_to(params["m0"], (B, D))
    for i in range(R):
        qw_loc = qw @ params["w_step"][i] + params["b_step"][i]
        cq = jnp.concatenate([ctrl, qw_loc], 1) @ params["w_cq"][i] + params["b_cq"][i]
        ca = jnp.sum(cq[:, None, :] * ctx * params["w_ca"][i][None, None, :], -1) + params["b_ca"][i]
        cv = jax.nn.softmax(ca, 1)
        ctrl = jnp.sum(cv[:, :, None] * ctx, 1)

        mem_trf = mem @ params["w_mtrf"][i] + params["b_mtrf"][i]
        cat = jnp.concatenate([mem_trf[:, None, :] * kb, kb], -1)
        cat_trf = cat @ params["w_clin"][i] + params["b_clin"][i]
        ctrled = cat_trf * ctrl[:, None, :]
        att = jnp.sum(ctrled * params["w_attn"][i][None, None, :], -1) + params["b_attn"][i]
        attw = jax.nn.softmax(att, -1)
        ri = jnp.sum(kb * attw[:, :, None], 1)

        m_info = jnp.concatenate([ri, mem], 1) @ params["w_mri"][i] + params["b_mri"][i]
        ci = jax.nn.sigmoid(jnp.sum(ctrl * params["w_gate"][i][None, :], 1, keepdims=True)
                            + params["b_gate"][i])
        mem = mem * ci + m_info * (1.0 - ci)

    z = jnp.concatenate([qw, mem], 1) @ params["w_o1"] + params["b_o1"]
    z = jnp.where(z >= 0.0, z, params["prelu"] * z)
    return z @ params["w_o2"] + params["b_o2"]


if __name__ == "__main__":
    R = 3          # recurrence_length
    D = 32         # ctrl_dim
    B = 2          # batch
    S = 8          # context sequence length

    key = jax.random.PRNGKey(0)
    k_p, k_q, k_i, k_c = jax.random.split(key, 4)
    params = init_params(R, D, k_p)

    question_words = jax.random.normal(k_q, (B, 2 * D), jnp.float32)
    image_vec = jax.random.normal(k_i, (B, D, IMG, IMG), jnp.float32)   # NCHW
    context_words = jax.random.normal(k_c, (B, S, D), jnp.float32)

    out = mac_forward(params, question_words, image_vec, context_words, R=R, D=D)
    out = jax.block_until_ready(out)

    ref = mac_reference(params, question_words, image_vec, context_words, R, D)
    assert out.shape == (B, OUT_DIM)
    # tolerance loosened (vs 2e-4 previously) for pl.reciprocal(approx=True)
    assert jnp.allclose(out, ref, rtol=2e-3, atol=2e-3), "mismatch vs JAX reference"

    print("KERNEL_OK")
</pallas_src>

<mosaic_0001>
module attributes {stable_mosaic.version = 11 : i64} {
  func.func @mac_kernel(%arg0: i32, %arg1: memref<2x64xf32, #tpu.memory_space<vmem>>, %arg2: memref<2x32x196xf32, #tpu.memory_space<vmem>>, %arg3: memref<2x8x32xf32, #tpu.memory_space<vmem>>, %arg4: memref<672x128xf32, #tpu.memory_space<vmem>>, %arg5: memref<26x128xf32, #tpu.memory_space<vmem>>, %arg6: memref<2x128xf32, #tpu.memory_space<vmem>>) attributes {dimension_semantics = [#tpu.dimension_semantics<parallel>], iteration_bounds = array<i64: 1>, scalar_prefetch = 0 : i64, scratch_operands = 0 : i64, tpu.core_type = #tpu.core_type<tc>, window_params = [{transform_indices = @transform_0, window_bounds = array<i64: 2, 64>}, {transform_indices = @transform_1, window_bounds = array<i64: 2, 32, 196>}, {transform_indices = @transform_2, window_bounds = array<i64: 2, 8, 32>}, {pipeline_mode = #tpu.pipeline_mode<synchronous>, transform_indices = @transform_3, window_bounds = array<i64: 672, 128>}, {pipeline_mode = #tpu.pipeline_mode<synchronous>, transform_indices = @transform_4, window_bounds = array<i64: 26, 128>}, {transform_indices = @transform_5, window_bounds = array<i64: 2, 128>}]} {
    %c0 = arith.constant 0 : index
    %c0_0 = arith.constant 0 : index
    %0 = vector.load %arg1[%c0, %c0_0] : memref<2x64xf32, #tpu.memory_space<vmem>>, vector<2x64xf32>
    %c0_1 = arith.constant 0 : index
    %c0_2 = arith.constant 0 : index
    %c0_3 = arith.constant 0 : index
    %1 = vector.load %arg2[%c0_1, %c0_2, %c0_3] : memref<2x32x196xf32, #tpu.memory_space<vmem>>, vector<2x32x196xf32>
    %c0_4 = arith.constant 0 : index
    %c0_5 = arith.constant 0 : index
    %c0_6 = arith.constant 0 : index
    %2 = vector.load %arg3[%c0_4, %c0_5, %c0_6] : memref<2x8x32xf32, #tpu.memory_space<vmem>>, vector<2x8x32xf32>
    %c0_7 = arith.constant 0 : index
    %c0_8 = arith.constant 0 : index
    %3 = vector.load %arg5[%c0_7, %c0_8] : memref<26x128xf32, #tpu.memory_space<vmem>>, vector<26x128xf32>
    %4 = vector.extract_strided_slice %3 {offsets = [0, 0], sizes = [1, 32], strides = [1, 1]} : vector<26x128xf32> to vector<1x32xf32>
    %5 = vector.shape_cast %4 : vector<1x32xf32> to vector<32xf32>
    %6 = vector.shape_cast %5 : vector<32xf32> to vector<1x32xf32>
    %7 = vector.broadcast %6 : vector<1x32xf32> to vector<2x32xf32>
    %8 = vector.extract_strided_slice %3 {offsets = [1, 0], sizes = [1, 32], strides = [1, 1]} : vector<26x128xf32> to vector<1x32xf32>
    %9 = vector.shape_cast %8 : vector<1x32xf32> to vector<32xf32>
    %10 = vector.shape_cast %9 : vector<32xf32> to vector<1x32xf32>
    %11 = vector.broadcast %10 : vector<1x32xf32> to vector<2x32xf32>
    %c0_9 = arith.constant 0 : index
    %c0_10 = arith.constant 0 : index
    %12 = vector.load %arg4[%c0_9, %c0_10] : memref<672x128xf32, #tpu.memory_space<vmem>>, vector<64x128xf32>
    %cst = arith.constant dense<0.000000e+00> : vector<2x128xf32>
    %13 = tpu.matmul %0, %12, %cst {dimension_numbers = #tpu.dot_dimension_numbers<[1], [0], [0], [1], [0, 0, 1, 1], [], []>} : vector<2x64xf32>, vector<64x128xf32>, vector<2x128xf32> -> vector<2x128xf32>
    %14 = vector.extract_strided_slice %13 {offsets = [0, 0], sizes = [2, 32], strides = [1, 1]} : vector<2x128xf32> to vector<2x32xf32>
    %15 = vector.extract_strided_slice %3 {offsets = [4, 0], sizes = [1, 32], strides = [1, 1]} : vector<26x128xf32> to vector<1x32xf32>
    %16 = vector.shape_cast %15 : vector<1x32xf32> to vector<32xf32>
    %17 = vector.shape_cast %16 : vector<32xf32> to vector<1x32xf32>
    %18 = vector.broadcast %17 : vector<1x32xf32> to vector<2x32xf32>
    %19 = arith.addf %14, %18 : vector<2x32xf32>
    %20 = tpu.concatenate %7, %19, %11 in 0 : vector<2x32xf32>, vector<2x32xf32>, vector<2x32xf32> -> vector<6x32xf32>
    %c64 = arith.constant 64 : index
    %c0_11 = arith.constant 0 : index
    %21 = vector.load %arg4[%c64, %c0_11] : memref<672x128xf32, #tpu.memory_space<vmem>>, vector<32x128xf32>
    %cst_12 = arith.constant dense<0.000000e+00> : vector<6x128xf32>
    %22 = tpu.matmul %20, %21, %cst_12 {dimension_numbers = #tpu.dot_dimension_numbers<[1], [0], [0], [1], [0, 0, 1, 1], [], []>} : vector<6x32xf32>, vector<32x128xf32>, vector<6x128xf32> -> vector<6x128xf32>
    %23 = vector.extract_strided_slice %22 {offsets = [0, 0], sizes = [2, 32], strides = [1, 1]} : vector<6x128xf32> to vector<2x32xf32>
    %24 = vector.extract_strided_slice %22 {offsets = [2, 32], sizes = [2, 32], strides = [1, 1]} : vector<6x128xf32> to vector<2x32xf32>
    %25 = arith.addf %23, %24 : vector<2x32xf32>
    %26 = vector.extract_strided_slice %3 {offsets = [5, 0], sizes = [1, 32], strides = [1, 1]} : vector<26x128xf32> to vector<1x32xf32>
    %27 = vector.shape_cast %26 : vector<1x32xf32> to vector<32xf32>
    %28 = vector.shape_cast %27 : vector<32xf32> to vector<1x32xf32>
    %29 = vector.broadcast %28 : vector<1x32xf32> to vector<2x32xf32>
    %30 = arith.addf %25, %29 : vector<2x32xf32>
    %31 = vector.extract_strided_slice %22 {offsets = [4, 64], sizes = [2, 32], strides = [1, 1]} : vector<6x128xf32> to vector<2x32xf32>
    %32 = vector.extract_strided_slice %3 {offsets = [7, 0], sizes = [1, 32], strides = [1, 1]} : vector<26x128xf32> to vector<1x32xf32>
    %33 = vector.shape_cast %32 : vector<1x32xf32> to vector<32xf32>
    %34 = vector.shape_cast %33 : vector<32xf32> to vector<1x32xf32>
    %35 = vector.broadcast %34 : vector<1x32xf32> to vector<2x32xf32>
    %36 = arith.addf %31, %35 : vector<2x32xf32>
    %37 = vector.extract_strided_slice %3 {offsets = [6, 0], sizes = [1, 32], strides = [1, 1]} : vector<26x128xf32> to vector<1x32xf32>
    %38 = vector.shape_cast %37 : vector<1x32xf32> to vector<32xf32>
    %39 = vector.shape_cast %38 : vector<32xf32> to vector<1x32xf32>
    %40 = vector.broadcast %39 : vector<1x32xf32> to vector<2x32xf32>
    %41 = arith.mulf %30, %40 : vector<2x32xf32>
    %42 = vector.shape_cast %41 : vector<2x32xf32> to vector<2x1x32xf32>
    %43 = vector.broadcast %42 : vector<2x1x32xf32> to vector<2x8x32xf32>
    %44 = arith.mulf %43, %2 : vector<2x8x32xf32>
    %cst_13 = arith.constant dense<0.000000e+00> : vector<2x8xf32>
    %45 = vector.multi_reduction <add>, %44, %cst_13 [2] : vector<2x8x32xf32> to vector<2x8xf32>
    %cst_14 = arith.constant dense<0xFF800000> : vector<2xf32>
    %46 = vector.multi_reduction <maximumf>, %45, %cst_14 [1] : vector<2x8xf32> to vector<2xf32>
    %47 = vector.shape_cast %46 : vector<2xf32> to vector<2x1xf32>
    %48 = vector.broadcast %47 : vector<2x1xf32> to vector<2x8xf32>
    %49 = arith.subf %45, %48 : vector<2x8xf32>
    %50 = math.exp %49 : vector<2x8xf32>
    %cst_15 = arith.constant dense<0.000000e+00> : vector<2xf32>
    %51 = vector.multi_reduction <add>, %50, %cst_15 [1] : vector<2x8xf32> to vector<2xf32>
    %52 = vector.shape_cast %51 : vector<2xf32> to vector<2x1xf32>
    %53 = tpu.reciprocal %52 {approx = true} : vector<2x1xf32> -> vector<2x1xf32>
    %54 = vector.broadcast %53 : vector<2x1xf32> to vector<2x8xf32>
    %55 = arith.mulf %50, %54 : vector<2x8xf32>
    %56 = vector.shape_cast %55 : vector<2x8xf32> to vector<2x8x1xf32>
    %57 = vector.broadcast %56 : vector<2x8x1xf32> to vector<2x8x32xf32>
    %58 = arith.mulf %57, %2 : vector<2x8x32xf32>
    %cst_16 = arith.constant dense<0.000000e+00> : vector<2x32xf32>
    %59 = vector.multi_reduction <add>, %58, %cst_16 [1] : vector<2x8x32xf32> to vector<2x32xf32>
    %60 = vector.extract_strided_slice %3 {offsets = [8, 0], sizes = [1, 32], strides = [1, 1]} : vector<26x128xf32> to vector<1x32xf32>
    %61 = vector.shape_cast %60 : vector<1x32xf32> to vector<32xf32>
    %62 = vector.shape_cast %61 : vector<32xf32> to vector<1x32xf32>
    %63 = vector.broadcast %62 : vector<1x32xf32> to vector<2x32xf32>
    %64 = arith.mulf %59, %63 : vector<2x32xf32>
    %c96 = arith.constant 96 : index
    %c0_17 = arith.constant 0 : index
    %65 = vector.load %arg4[%c96, %c0_17] : memref<672x128xf32, #tpu.memory_space<vmem>>, vector<32x128xf32>
    %cst_18 = arith.constant dense<0.000000e+00> : vector<2x128xf32>
    %66 = tpu.matmul %64, %65, %cst_18 {dimension_numbers = #tpu.dot_dimension_numbers<[1], [0], [0], [1], [0, 0, 1, 1], [], []>} : vector<2x32xf32>, vector<32x128xf32>, vector<2x128xf32> -> vector<2x128xf32>
    %67 = vector.extract_strided_slice %66 {offsets = [0, 0], sizes = [2, 32], strides = [1, 1]} : vector<2x128xf32> to vector<2x32xf32>
    %68 = arith.mulf %36, %67 : vector<2x32xf32>
    %69 = vector.extract_strided_slice %66 {offsets = [0, 32], sizes = [2, 32], strides = [1, 1]} : vector<2x128xf32> to vector<2x32xf32>
    %70 = arith.addf %68, %69 : vector<2x32xf32>
    %71 = vector.shape_cast %70 : vector<2x32xf32> to vector<2x32x1xf32>
    %72 = vector.broadcast %71 : vector<2x32x1xf32> to vector<2x32x196xf32>
    %73 = arith.mulf %72, %1 : vector<2x32x196xf32>
    %cst_19 = arith.constant dense<0.000000e+00> : vector<2x196xf32>
    %74 = vector.multi_reduction <add>, %73, %cst_19 [1] : vector<2x32x196xf32> to vector<2x196xf32>
    %cst_20 = arith.constant dense<0xFF800000> : vector<2xf32>
    %75 = vector.multi_reduction <maximumf>, %74, %cst_20 [1] : vector<2x196xf32> to vector<2xf32>
    %76 = vector.shape_cast %75 : vector<2xf32> to vector<2x1xf32>
    %77 = vector.broadcast %76 : vector<2x1xf32> to vector<2x196xf32>
    %78 = arith.subf %74, %77 : vector<2x196xf32>
    %79 = math.exp %78 : vector<2x196xf32>
    %cst_21 = arith.constant dense<0.000000e+00> : vector<2xf32>
    %80 = vector.multi_reduction <add>, %79, %cst_21 [1] : vector<2x196xf32> to vector<2xf32>
    %81 = vector.shape_cast %80 : vector<2xf32> to vector<2x1xf32>
    %82 = tpu.reciprocal %81 {approx = true} : vector<2x1xf32> -> vector<2x1xf32>
    %83 = vector.broadcast %82 : vector<2x1xf32> to vector<2x196xf32>
    %84 = arith.mulf %79, %83 : vector<2x196xf32>
    %85 = vector.shape_cast %84 : vector<2x196xf32> to vector<2x1x196xf32>
    %86 = vector.broadcast %85 : vector<2x1x196xf32> to vector<2x32x196xf32>
    %87 = arith.mulf %86, %1 : vector<2x32x196xf32>
    %cst_22 = arith.constant dense<0.000000e+00> : vector<2x32xf32>
    %88 = vector.multi_reduction <add>, %87, %cst_22 [2] : vector<2x32x196xf32> to vector<2x32xf32>
    %89 = tpu.concatenate %88, %11 in 1 : vector<2x32xf32>, vector<2x32xf32> -> vector<2x64xf32>
    %c128 = arith.constant 128 : index
    %c0_23 = arith.constant 0 : index
    %90 = vector.load %arg4[%c128, %c0_23] : memref<672x128xf32, #tpu.memory_space<vmem>>, vector<64x128xf32>
    %cst_24 = arith.constant dense<0.000000e+00> : vector<2x128xf32>
    %91 = tpu.matmul %89, %90, %cst_24 {dimension_numbers = #tpu.dot_dimension_numbers<[1], [0], [0], [1], [0, 0, 1, 1], [], []>} : vector<2x64xf32>, vector<64x128xf32>, vector<2x128xf32> -> vector<2x128xf32>
    %92 = vector.extract_strided_slice %91 {offsets = [0, 0], sizes = [2, 32], strides = [1, 1]} : vector<2x128xf32> to vector<2x32xf32>
    %93 = vector.extract_strided_slice %3 {offsets = [9, 0], sizes = [1, 32], strides = [1, 1]} : vector<26x128xf32> to vector<1x32xf32>
    %94 = vector.shape_cast %93 : vector<1x32xf32> to vector<32xf32>
    %95 = vector.shape_cast %94 : vector<32xf32> to vector<1x32xf32>
    %96 = vector.broadcast %95 : vector<1x32xf32> to vector<2x32xf32>
    %97 = arith.addf %92, %96 : vector<2x32xf32>
    %98 = vector.extract_strided_slice %3 {offsets = [10, 0], sizes = [1, 32], strides = [1, 1]} : vector<26x128xf32> to vector<1x32xf32>
    %99 = vector.shape_cast %98 : vector<1x32xf32> to vector<32xf32>
    %100 = vector.shape_cast %99 : vector<32xf32> to vector<1x32xf32>
    %101 = vector.broadcast %100 : vector<1x32xf32> to vector<2x32xf32>
    %102 = arith.mulf %59, %101 : vector<2x32xf32>
    %cst_25 = arith.constant dense<0.000000e+00> : vector<2xf32>
    %103 = vector.multi_reduction <add>, %102, %cst_25 [1] : vector<2x32xf32> to vector<2xf32>
    %104 = vector.shape_cast %103 : vector<2xf32> to vector<2x1xf32>
    %105 = vector.extract_strided_slice %3 {offsets = [25, 1], sizes = [1, 1], strides = [1, 1]} : vector<26x128xf32> to vector<1x1xf32>
    %106 = vector.shape_cast %105 : vector<1x1xf32> to vector<1xf32>
    %107 = vector.shape_cast %106 : vector<1xf32> to vector<1x1xf32>
    %108 = vector.broadcast %107 : vector<1x1xf32> to vector<2x1xf32>
    %109 = arith.addf %104, %108 : vector<2x1xf32>
    %110 = arith.negf %109 : vector<2x1xf32>
    %111 = math.exp %110 : vector<2x1xf32>
    %cst_26 = arith.constant 1.000000e+00 : f32
    %112 = vector.broadcast %cst_26 : f32 to vector<2x1xf32>
    %113 = arith.addf %112, %111 : vector<2x1xf32>
    %114 = arith.divf %112, %113 : vector<2x1xf32>
    %115 = vector.broadcast %114 : vector<2x1xf32> to vector<2x32xf32>
    %116 = arith.mulf %11, %115 : vector<2x32xf32>
    %cst_27 = arith.constant 1.000000e+00 : f32
    %117 = vector.broadcast %cst_27 : f32 to vector<2x1xf32>
    %118 = arith.subf %117, %114 : vector<2x1xf32>
    %119 = vector.broadcast %118 : vector<2x1xf32> to vector<2x32xf32>
    %120 = arith.mulf %97, %119 : vector<2x32xf32>
    %121 = arith.addf %116, %120 : vector<2x32xf32>
    %122 = vector.extract_strided_slice %13 {offsets = [0, 32], sizes = [2, 32], strides = [1, 1]} : vector<2x128xf32> to vector<2x32xf32>
    %123 = vector.extract_strided_slice %3 {offsets = [11, 0], sizes = [1, 32], strides = [1, 1]} : vector<26x128xf32> to vector<1x32xf32>
    %124 = vector.shape_cast %123 : vector<1x32xf32> to vector<32xf32>
    %125 = vector.shape_cast %124 : vector<32xf32> to vector<1x32xf32>
    %126 = vector.broadcast %125 : vector<1x32xf32> to vector<2x32xf32>
    %127 = arith.addf %122, %126 : vector<2x32xf32>
    %128 = tpu.concatenate %59, %127, %121 in 0 : vector<2x32xf32>, vector<2x32xf32>, vector<2x32xf32> -> vector<6x32xf32>
    %c192 = arith.constant 192 : index
    %c0_28 = arith.constant 0 : index
    %129 = vector.load %arg4[%c192, %c0_28] : memref<672x128xf32, #tpu.memory_space<vmem>>, vector<32x128xf32>
    %cst_29 = arith.constant dense<0.000000e+00> : vector<6x128xf32>
    %130 = tpu.matmul %128, %129, %cst_29 {dimension_numbers = #tpu.dot_dimension_numbers<[1], [0], [0], [1], [0, 0, 1, 1], [], []>} : vector<6x32xf32>, vector<32x128xf32>, vector<6x128xf32> -> vector<6x128xf32>
    %131 = vector.extract_strided_slice %130 {offsets = [0, 0], sizes = [2, 32], strides = [1, 1]} : vector<6x128xf32> to vector<2x32xf32>
    %132 = vector.extract_strided_slice %130 {offsets = [2, 32], sizes = [2, 32], strides = [1, 1]} : vector<6x128xf32> to vector<2x32xf32>
    %133 = arith.addf %131, %132 : vector<2x32xf32>
    %134 = vector.extract_strided_slice %3 {offsets = [12, 0], sizes = [1, 32], strides = [1, 1]} : vector<26x128xf32> to vector<1x32xf32>
    %135 = vector.shape_cast %134 : vector<1x32xf32> to vector<32xf32>
    %136 = vector.shape_cast %135 : vector<32xf32> to vector<1x32xf32>
    %137 = vector.broadcast %136 : vector<1x32xf32> to vector<2x32xf32>
    %138 = arith.addf %133, %137 : vector<2x32xf32>
    %139 = vector.extract_strided_slice %130 {offsets = [4, 64], sizes = [2, 32], strides = [1, 1]} : vector<6x128xf32> to vector<2x32xf32>
    %140 = vector.extract_strided_slice %3 {offsets = [14, 0], sizes = [1, 32], strides = [1, 1]} : vector<26x128xf32> to vector<1x32xf32>
    %141 = vector.shape_cast %140 : vector<1x32xf32> to vector<32xf32>
    %142 = vector.shape_cast %141 : vector<32xf32> to vector<1x32xf32>
    %143 = vector.broadcast %142 : vector<1x32xf32> to vector<2x32xf32>
    %144 = arith.addf %139, %143 : vector<2x32xf32>
    %145 = vector.extract_strided_slice %3 {offsets = [13, 0], sizes = [1, 32], strides = [1, 1]} : vector<26x128xf32> to vector<1x32xf32>
    %146 = vector.shape_cast %145 : vector<1x32xf32> to vector<32xf32>
    %147 = vector.shape_cast %146 : vector<32xf32> to vector<1x32xf32>
    %148 = vector.broadcast %147 : vector<1x32xf32> to vector<2x32xf32>
    %149 = arith.mulf %138, %148 : vector<2x32xf32>
    %150 = vector.shape_cast %149 : vector<2x32xf32> to vector<2x1x32xf32>
    %151 = vector.broadcast %150 : vector<2x1x32xf32> to vector<2x8x32xf32>
    %152 = arith.mulf %151, %2 : vector<2x8x32xf32>
    %cst_30 = arith.constant dense<0.000000e+00> : vector<2x8xf32>
    %153 = vector.multi_reduction <add>, %152, %cst_30 [2] : vector<2x8x32xf32> to vector<2x8xf32>
    %cst_31 = arith.constant dense<0xFF800000> : vector<2xf32>
    %154 = vector.multi_reduction <maximumf>, %153, %cst_31 [1] : vector<2x8xf32> to vector<2xf32>
    %155 = vector.shape_cast %154 : vector<2xf32> to vector<2x1xf32>
    %156 = vector.broadcast %155 : vector<2x1xf32> to vector<2x8xf32>
    %157 = arith.subf %153, %156 : vector<2x8xf32>
    %158 = math.exp %157 : vector<2x8xf32>
    %cst_32 = arith.constant dense<0.000000e+00> : vector<2xf32>
    %159 = vector.multi_reduction <add>, %158, %cst_32 [1] : vector<2x8xf32> to vector<2xf32>
    %160 = vector.shape_cast %159 : vector<2xf32> to vector<2x1xf32>
    %161 = tpu.reciprocal %160 {approx = true} : vector<2x1xf32> -> vector<2x1xf32>
    %162 = vector.broadcast %161 : vector<2x1xf32> to vector<2x8xf32>
    %163 = arith.mulf %158, %162 : vector<2x8xf32>
    %164 = vector.shape_cast %163 : vector<2x8xf32> to vector<2x8x1xf32>
    %165 = vector.broadcast %164 : vector<2x8x1xf32> to vector<2x8x32xf32>
    %166 = arith.mulf %165, %2 : vector<2x8x32xf32>
    %cst_33 = arith.constant dense<0.000000e+00> : vector<2x32xf32>
    %167 = vector.multi_reduction <add>, %166, %cst_33 [1] : vector<2x8x32xf32> to vector<2x32xf32>
    %168 = vector.extract_strided_slice %3 {offsets = [15, 0], sizes = [1, 32], strides = [1, 1]} : vector<26x128xf32> to vector<1x32xf32>
    %169 = vector.shape_cast %168 : vector<1x32xf32> to vector<32xf32>
    %170 = vector.shape_cast %169 : vector<32xf32> to vector<1x32xf32>
    %171 = vector.broadcast %170 : vector<1x32xf32> to vector<2x32xf32>
    %172 = arith.mulf %167, %171 : vector<2x32xf32>
    %c224 = arith.constant 224 : index
    %c0_34 = arith.constant 0 : index
    %173 = vector.load %arg4[%c224, %c0_34] : memref<672x128xf32, #tpu.memory_space<vmem>>, vector<32x128xf32>
    %cst_35 = arith.constant dense<0.000000e+00> : vector<2x128xf32>
    %174 = tpu.matmul %172, %173, %cst_35 {dimension_numbers = #tpu.dot_dimension_numbers<[1], [0], [0], [1], [0, 0, 1, 1], [], []>} : vector<2x32xf32>, vector<32x128xf32>, vector<2x128xf32> -> vector<2x128xf32>
    %175 = vector.extract_strided_slice %174 {offsets = [0, 0], sizes = [2, 32], strides = [1, 1]} : vector<2x128xf32> to vector<2x32xf32>
    %176 = arith.mulf %144, %175 : vector<2x32xf32>
    %177 = vector.extract_strided_slice %174 {offsets = [0, 32], sizes = [2, 32], strides = [1, 1]} : vector<2x128xf32> to vector<2x32xf32>
    %178 = arith.addf %176, %177 : vector<2x32xf32>
    %179 = vector.shape_cast %178 : vector<2x32xf32> to vector<2x32x1xf32>
    %180 = vector.broadcast %179 : vector<2x32x1xf32> to vector<2x32x196xf32>
    %181 = arith.mulf %180, %1 : vector<2x32x196xf32>
    %cst_36 = arith.constant dense<0.000000e+00> : vector<2x196xf32>
    %182 = vector.multi_reduction <add>, %181, %cst_36 [1] : vector<2x32x196xf32> to vector<2x196xf32>
    %cst_37 = arith.constant dense<0xFF800000> : vector<2xf32>
    %183 = vector.multi_reduction <maximumf>, %182, %cst_37 [1] : vector<2x196xf32> to vector<2xf32>
    %184 = vector.shape_cast %183 : vector<2xf32> to vector<2x1xf32>
    %185 = vector.broadcast %184 : vector<2x1xf32> to vector<2x196xf32>
    %186 = arith.subf %182, %185 : vector<2x196xf32>
    %187 = math.exp %186 : vector<2x196xf32>
    %cst_38 = arith.constant dense<0.000000e+00> : vector<2xf32>
    %188 = vector.multi_reduction <add>, %187, %cst_38 [1] : vector<2x196xf32> to vector<2xf32>
    %189 = vector.shape_cast %188 : vector<2xf32> to vector<2x1xf32>
    %190 = tpu.reciprocal %189 {approx = true} : vector<2x1xf32> -> vector<2x1xf32>
    %191 = vector.broadcast %190 : vector<2x1xf32> to vector<2x196xf32>
    %192 = arith.mulf %187, %191 : vector<2x196xf32>
    %193 = vector.shape_cast %192 : vector<2x196xf32> to vector<2x1x196xf32>
    %194 = vector.broadcast %193 : vector<2x1x196xf32> to vector<2x32x196xf32>
    %195 = arith.mulf %194, %1 : vector<2x32x196xf32>
    %cst_39 = arith.constant dense<0.000000e+00> : vector<2x32xf32>
    %196 = vector.multi_reduction <add>, %195, %cst_39 [2] : vector<2x32x196xf32> to vector<2x32xf32>
    %197 = tpu.concatenate %196, %121 in 1 : vector<2x32xf32>, vector<2x32xf32> -> vector<2x64xf32>
    %c256 = arith.constant 256 : index
    %c0_40 = arith.constant 0 : index
    %198 = vector.load %arg4[%c256, %c0_40] : memref<672x128xf32, #tpu.memory_space<vmem>>, vector<64x128xf32>
    %cst_41 = arith.constant dense<0.000000e+00> : vector<2x128xf32>
    %199 = tpu.matmul %197, %198, %cst_41 {dimension_numbers = #tpu.dot_dimension_numbers<[1], [0], [0], [1], [0, 0, 1, 1], [], []>} : vector<2x64xf32>, vector<64x128xf32>, vector<2x128xf32> -> vector<2x128xf32>
    %200 = vector.extract_strided_slice %199 {offsets = [0, 0], sizes = [2, 32], strides = [1, 1]} : vector<2x128xf32> to vector<2x32xf32>
    %201 = vector.extract_strided_slice %3 {offsets = [16, 0], sizes = [1, 32], strides = [1, 1]} : vector<26x128xf32> to vector<1x32xf32>
    %202 = vector.shape_cast %201 : vector<1x32xf32> to vector<32xf32>
    %203 = vector.shape_cast %202 : vector<32xf32> to vector<1x32xf32>
    %204 = vector.broadcast %203 : vector<1x32xf32> to vector<2x32xf32>
    %205 = arith.addf %200, %204 : vector<2x32xf32>
    %206 = vector.extract_strided_slice %3 {offsets = [17, 0], sizes = [1, 32], strides = [1, 1]} : vector<26x128xf32> to vector<1x32xf32>
    %207 = vector.shape_cast %206 : vector<1x32xf32> to vector<32xf32>
    %208 = vector.shape_cast %207 : vector<32xf32> to vector<1x32xf32>
    %209 = vector.broadcast %208 : vector<1x32xf32> to vector<2x32xf32>
    %210 = arith.mulf %167, %209 : vector<2x32xf32>
    %cst_42 = arith.constant dense<0.000000e+00> : vector<2xf32>
    %211 = vector.multi_reduction <add>, %210, %cst_42 [1] : vector<2x32xf32> to vector<2xf32>
    %212 = vector.shape_cast %211 : vector<2xf32> to vector<2x1xf32>
    %213 = vector.extract_strided_slice %3 {offsets = [25, 2], sizes = [1, 1], strides = [1, 1]} : vector<26x128xf32> to vector<1x1xf32>
    %214 = vector.shape_cast %213 : vector<1x1xf32> to vector<1xf32>
    %215 = vector.shape_cast %214 : vector<1xf32> to vector<1x1xf32>
    %216 = vector.broadcast %215 : vector<1x1xf32> to vector<2x1xf32>
    %217 = arith.addf %212, %216 : vector<2x1xf32>
    %218 = arith.negf %217 : vector<2x1xf32>
    %219 = math.exp %218 : vector<2x1xf32>
    %cst_43 = arith.constant 1.000000e+00 : f32
    %220 = vector.broadcast %cst_43 : f32 to vector<2x1xf32>
    %221 = arith.addf %220, %219 : vector<2x1xf32>
    %222 = arith.divf %220, %221 : vector<2x1xf32>
    %223 = vector.broadcast %222 : vector<2x1xf32> to vector<2x32xf32>
    %224 = arith.mulf %121, %223 : vector<2x32xf32>
    %cst_44 = arith.constant 1.000000e+00 : f32
    %225 = vector.broadcast %cst_44 : f32 to vector<2x1xf32>
    %226 = arith.subf %225, %222 : vector<2x1xf32>
    %227 = vector.broadcast %226 : vector<2x1xf32> to vector<2x32xf32>
    %228 = arith.mulf %205, %227 : vector<2x32xf32>
    %229 = arith.addf %224, %228 : vector<2x32xf32>
    %230 = vector.extract_strided_slice %13 {offsets = [0, 64], sizes = [2, 32], strides = [1, 1]} : vector<2x128xf32> to vector<2x32xf32>
    %231 = vector.extract_strided_slice %3 {offsets = [18, 0], sizes = [1, 32], strides = [1, 1]} : vector<26x128xf32> to vector<1x32xf32>
    %232 = vector.shape_cast %231 : vector<1x32xf32> to vector<32xf32>
    %233 = vector.shape_cast %232 : vector<32xf32> to vector<1x32xf32>
    %234 = vector.broadcast %233 : vector<1x32xf32> to vector<2x32xf32>
    %235 = arith.addf %230, %234 : vector<2x32xf32>
    %236 = tpu.concatenate %167, %235, %229 in 0 : vector<2x32xf32>, vector<2x32xf32>, vector<2x32xf32> -> vector<6x32xf32>
    %c320 = arith.constant 320 : index
    %c0_45 = arith.constant 0 : index
    %237 = vector.load %arg4[%c320, %c0_45] : memref<672x128xf32, #tpu.memory_space<vmem>>, vector<32x128xf32>
    %cst_46 = arith.constant dense<0.000000e+00> : vector<6x128xf32>
    %238 = tpu.matmul %236, %237, %cst_46 {dimension_numbers = #tpu.dot_dimension_numbers<[1], [0], [0], [1], [0, 0, 1, 1], [], []>} : vector<6x32xf32>, vector<32x128xf32>, vector<6x128xf32> -> vector<6x128xf32>
    %239 = vector.extract_strided_slice %238 {offsets = [0, 0], sizes = [2, 32], strides = [1, 1]} : vector<6x128xf32> to vector<2x32xf32>
    %240 = vector.extract_strided_slice %238 {offsets = [2, 32], sizes = [2, 32], strides = [1, 1]} : vector<6x128xf32> to vector<2x32xf32>
    %241 = arith.addf %239, %240 : vector<2x32xf32>
    %242 = vector.extract_strided_slice %3 {offsets = [19, 0], sizes = [1, 32], strides = [1, 1]} : vector<26x128xf32> to vector<1x32xf32>
    %243 = vector.shape_cast %242 : vector<1x32xf32> to vector<32xf32>
    %244 = vector.shape_cast %243 : vector<32xf32> to vector<1x32xf32>
    %245 = vector.broadcast %244 : vector<1x32xf32> to vector<2x32xf32>
    %246 = arith.addf %241, %245 : vector<2x32xf32>
    %247 = vector.extract_strided_slice %238 {offsets = [4, 64], sizes = [2, 32], strides = [1, 1]} : vector<6x128xf32> to vector<2x32xf32>
    %248 = vector.extract_strided_slice %3 {offsets = [21, 0], sizes = [1, 32], strides = [1, 1]} : vector<26x128xf32> to vector<1x32xf32>
    %249 = vector.shape_cast %248 : vector<1x32xf32> to vector<32xf32>
    %250 = vector.shape_cast %249 : vector<32xf32> to vector<1x32xf32>
    %251 = vector.broadcast %250 : vector<1x32xf32> to vector<2x32xf32>
    %252 = arith.addf %247, %251 : vector<2x32xf32>
    %253 = vector.extract_strided_slice %3 {offsets = [20, 0], sizes = [1, 32], strides = [1, 1]} : vector<26x128xf32> to vector<1x32xf32>
    %254 = vector.shape_cast %253 : vector<1x32xf32> to vector<32xf32>
    %255 = vector.shape_cast %254 : vector<32xf32> to vector<1x32xf32>
    %256 = vector.broadcast %255 : vector<1x32xf32> to vector<2x32xf32>
    %257 = arith.mulf %246, %256 : vector<2x32xf32>
    %258 = vector.shape_cast %257 : vector<2x32xf32> to vector<2x1x32xf32>
    %259 = vector.broadcast %258 : vector<2x1x32xf32> to vector<2x8x32xf32>
    %260 = arith.mulf %259, %2 : vector<2x8x32xf32>
    %cst_47 = arith.constant dense<0.000000e+00> : vector<2x8xf32>
    %261 = vector.multi_reduction <add>, %260, %cst_47 [2] : vector<2x8x32xf32> to vector<2x8xf32>
    %cst_48 = arith.constant dense<0xFF800000> : vector<2xf32>
    %262 = vector.multi_reduction <maximumf>, %261, %cst_48 [1] : vector<2x8xf32> to vector<2xf32>
    %263 = vector.shape_cast %262 : vector<2xf32> to vector<2x1xf32>
    %264 = vector.broadcast %263 : vector<2x1xf32> to vector<2x8xf32>
    %265 = arith.subf %261, %264 : vector<2x8xf32>
    %266 = math.exp %265 : vector<2x8xf32>
    %cst_49 = arith.constant dense<0.000000e+00> : vector<2xf32>
    %267 = vector.multi_reduction <add>, %266, %cst_49 [1] : vector<2x8xf32> to vector<2xf32>
    %268 = vector.shape_cast %267 : vector<2xf32> to vector<2x1xf32>
    %269 = tpu.reciprocal %268 {approx = true} : vector<2x1xf32> -> vector<2x1xf32>
    %270 = vector.broadcast %269 : vector<2x1xf32> to vector<2x8xf32>
    %271 = arith.mulf %266, %270 : vector<2x8xf32>
    %272 = vector.shape_cast %271 : vector<2x8xf32> to vector<2x8x1xf32>
    %273 = vector.broadcast %272 : vector<2x8x1xf32> to vector<2x8x32xf32>
    %274 = arith.mulf %273, %2 : vector<2x8x32xf32>
    %cst_50 = arith.constant dense<0.000000e+00> : vector<2x32xf32>
    %275 = vector.multi_reduction <add>, %274, %cst_50 [1] : vector<2x8x32xf32> to vector<2x32xf32>
    %276 = vector.extract_strided_slice %3 {offsets = [22, 0], sizes = [1, 32], strides = [1, 1]} : vector<26x128xf32> to vector<1x32xf32>
    %277 = vector.shape_cast %276 : vector<1x32xf32> to vector<32xf32>
    %278 = vector.shape_cast %277 : vector<32xf32> to vector<1x32xf32>
    %279 = vector.broadcast %278 : vector<1x32xf32> to vector<2x32xf32>
    %280 = arith.mulf %275, %279 : vector<2x32xf32>
    %c352 = arith.constant 352 : index
    %c0_51 = arith.constant 0 : index
    %281 = vector.load %arg4[%c352, %c0_51] : memref<672x128xf32, #tpu.memory_space<vmem>>, vector<32x128xf32>
    %cst_52 = arith.constant dense<0.000000e+00> : vector<2x128xf32>
    %282 = tpu.matmul %280, %281, %cst_52 {dimension_numbers = #tpu.dot_dimension_numbers<[1], [0], [0], [1], [0, 0, 1, 1], [], []>} : vector<2x32xf32>, vector<32x128xf32>, vector<2x128xf32> -> vector<2x128xf32>
    %283 = vector.extract_strided_slice %282 {offsets = [0, 0], sizes = [2, 32], strides = [1, 1]} : vector<2x128xf32> to vector<2x32xf32>
    %284 = arith.mulf %252, %283 : vector<2x32xf32>
    %285 = vector.extract_strided_slice %282 {offsets = [0, 32], sizes = [2, 32], strides = [1, 1]} : vector<2x128xf32> to vector<2x32xf32>
    %286 = arith.addf %284, %285 : vector<2x32xf32>
    %287 = vector.shape_cast %286 : vector<2x32xf32> to vector<2x32x1xf32>
    %288 = vector.broadcast %287 : vector<2x32x1xf32> to vector<2x32x196xf32>
    %289 = arith.mulf %288, %1 : vector<2x32x196xf32>
    %cst_53 = arith.constant dense<0.000000e+00> : vector<2x196xf32>
    %290 = vector.multi_reduction <add>, %289, %cst_53 [1] : vector<2x32x196xf32> to vector<2x196xf32>
    %cst_54 = arith.constant dense<0xFF800000> : vector<2xf32>
    %291 = vector.multi_reduction <maximumf>, %290, %cst_54 [1] : vector<2x196xf32> to vector<2xf32>
    %292 = vector.shape_cast %291 : vector<2xf32> to vector<2x1xf32>
    %293 = vector.broadcast %292 : vector<2x1xf32> to vector<2x196xf32>
    %294 = arith.subf %290, %293 : vector<2x196xf32>
    %295 = math.exp %294 : vector<2x196xf32>
    %cst_55 = arith.constant dense<0.000000e+00> : vector<2xf32>
    %296 = vector.multi_reduction <add>, %295, %cst_55 [1] : vector<2x196xf32> to vector<2xf32>
    %297 = vector.shape_cast %296 : vector<2xf32> to vector<2x1xf32>
    %298 = tpu.reciprocal %297 {approx = true} : vector<2x1xf32> -> vector<2x1xf32>
    %299 = vector.broadcast %298 : vector<2x1xf32> to vector<2x196xf32>
    %300 = arith.mulf %295, %299 : vector<2x196xf32>
    %301 = vector.shape_cast %300 : vector<2x196xf32> to vector<2x1x196xf32>
    %302 = vector.broadcast %301 : vector<2x1x196xf32> to vector<2x32x196xf32>
    %303 = arith.mulf %302, %1 : vector<2x32x196xf32>
    %cst_56 = arith.constant dense<0.000000e+00> : vector<2x32xf32>
    %304 = vector.multi_reduction <add>, %303, %cst_56 [2] : vector<2x32x196xf32> to vector<2x32xf32>
    %305 = tpu.concatenate %304, %229 in 1 : vector<2x32xf32>, vector<2x32xf32> -> vector<2x64xf32>
    %c384 = arith.constant 384 : index
    %c0_57 = arith.constant 0 : index
    %306 = vector.load %arg4[%c384, %c0_57] : memref<672x128xf32, #tpu.memory_space<vmem>>, vector<64x128xf32>
    %cst_58 = arith.constant dense<0.000000e+00> : vector<2x128xf32>
    %307 = tpu.matmul %305, %306, %cst_58 {dimension_numbers = #tpu.dot_dimension_numbers<[1], [0], [0], [1], [0, 0, 1, 1], [], []>} : vector<2x64xf32>, vector<64x128xf32>, vector<2x128xf32> -> vector<2x128xf32>
    %308 = vector.extract_strided_slice %307 {offsets = [0, 0], sizes = [2, 32], strides = [1, 1]} : vector<2x128xf32> to vector<2x32xf32>
    %309 = vector.extract_strided_slice %3 {offsets = [23, 0], sizes = [1, 32], strides = [1, 1]} : vector<26x128xf32> to vector<1x32xf32>
    %310 = vector.shape_cast %309 : vector<1x32xf32> to vector<32xf32>
    %311 = vector.shape_cast %310 : vector<32xf32> to vector<1x32xf32>
    %312 = vector.broadcast %311 : vector<1x32xf32> to vector<2x32xf32>
    %313 = arith.addf %308, %312 : vector<2x32xf32>
    %314 = vector.extract_strided_slice %3 {offsets = [24, 0], sizes = [1, 32], strides = [1, 1]} : vector<26x128xf32> to vector<1x32xf32>
    %315 = vector.shape_cast %314 : vector<1x32xf32> to vector<32xf32>
    %316 = vector.shape_cast %315 : vector<32xf32> to vector<1x32xf32>
    %317 = vector.broadcast %316 : vector<1x32xf32> to vector<2x32xf32>
    %318 = arith.mulf %275, %317 : vector<2x32xf32>
    %cst_59 = arith.constant dense<0.000000e+00> : vector<2xf32>
    %319 = vector.multi_reduction <add>, %318, %cst_59 [1] : vector<2x32xf32> to vector<2xf32>
    %320 = vector.shape_cast %319 : vector<2xf32> to vector<2x1xf32>
    %321 = vector.extract_strided_slice %3 {offsets = [25, 3], sizes = [1, 1], strides = [1, 1]} : vector<26x128xf32> to vector<1x1xf32>
    %322 = vector.shape_cast %321 : vector<1x1xf32> to vector<1xf32>
    %323 = vector.shape_cast %322 : vector<1xf32> to vector<1x1xf32>
    %324 = vector.broadcast %323 : vector<1x1xf32> to vector<2x1xf32>
    %325 = arith.addf %320, %324 : vector<2x1xf32>
    %326 = arith.negf %325 : vector<2x1xf32>
    %327 = math.exp %326 : vector<2x1xf32>
    %cst_60 = arith.constant 1.000000e+00 : f32
    %328 = vector.broadcast %cst_60 : f32 to vector<2x1xf32>
    %329 = arith.addf %328, %327 : vector<2x1xf32>
    %330 = arith.divf %328, %329 : vector<2x1xf32>
    %331 = vector.broadcast %330 : vector<2x1xf32> to vector<2x32xf32>
    %332 = arith.mulf %229, %331 : vector<2x32xf32>
    %cst_61 = arith.constant 1.000000e+00 : f32
    %333 = vector.broadcast %cst_61 : f32 to vector<2x1xf32>
    %334 = arith.subf %333, %330 : vector<2x1xf32>
    %335 = vector.broadcast %334 : vector<2x1xf32> to vector<2x32xf32>
    %336 = arith.mulf %313, %335 : vector<2x32xf32>
    %337 = arith.addf %332, %336 : vector<2x32xf32>
    %338 = tpu.concatenate %0, %337 in 1 : vector<2x64xf32>, vector<2x32xf32> -> vector<2x96xf32>
    %c448 = arith.constant 448 : index
    %c0_62 = arith.constant 0 : index
    %339 = vector.load %arg4[%c448, %c0_62] : memref<672x128xf32, #tpu.memory_space<vmem>>, vector<96x128xf32>
    %cst_63 = arith.constant dense<0.000000e+00> : vector<2x128xf32>
    %340 = tpu.matmul %338, %339, %cst_63 {dimension_numbers = #tpu.dot_dimension_numbers<[1], [0], [0], [1], [0, 0, 1, 1], [], []>} : vector<2x96xf32>, vector<96x128xf32>, vector<2x128xf32> -> vector<2x128xf32>
    %341 = vector.extract_strided_slice %3 {offsets = [2, 0], sizes = [1, 128], strides = [1, 1]} : vector<26x128xf32> to vector<1x128xf32>
    %342 = vector.shape_cast %341 : vector<1x128xf32> to vector<128xf32>
    %343 = vector.shape_cast %342 : vector<128xf32> to vector<1x128xf32>
    %344 = vector.broadcast %343 : vector<1x128xf32> to vector<2x128xf32>
    %345 = arith.addf %340, %344 : vector<2x128xf32>
    %346 = vector.extract_strided_slice %3 {offsets = [25, 0], sizes = [1, 1], strides = [1, 1]} : vector<26x128xf32> to vector<1x1xf32>
    %347 = vector.shape_cast %346 : vector<1x1xf32> to vector<1xf32>
    %cst_64 = arith.constant 0.000000e+00 : f32
    %348 = vector.broadcast %cst_64 : f32 to vector<2x128xf32>
    %349 = arith.cmpf oge, %345, %348 : vector<2x128xf32>
    %350 = vector.shape_cast %347 : vector<1xf32> to vector<1x1xf32>
    %351 = vector.broadcast %350 : vector<1x1xf32> to vector<2x128xf32>
    %352 = arith.mulf %351, %345 : vector<2x128xf32>
    %353 = arith.select %349, %345, %352 : vector<2x128xi1>, vector<2x128xf32>
    %c544 = arith.constant 544 : index
    %c0_65 = arith.constant 0 : index
    %354 = vector.load %arg4[%c544, %c0_65] : memref<672x128xf32, #tpu.memory_space<vmem>>, vector<128x128xf32>
    %cst_66 = arith.constant dense<0.000000e+00> : vector<2x128xf32>
    %355 = tpu.matmul %353, %354, %cst_66 {dimension_numbers = #tpu.dot_dimension_numbers<[1], [0], [0], [1], [0, 0, 1, 1], [], []>} : vector<2x128xf32>, vector<128x128xf32>, vector<2x128xf32> -> vector<2x128xf32>
    %356 = vector.extract_strided_slice %3 {offsets = [3, 0], sizes = [1, 128], strides = [1, 1]} : vector<26x128xf32> to vector<1x128xf32>
    %357 = vector.shape_cast %356 : vector<1x128xf32> to vector<128xf32>
    %358 = vector.shape_cast %357 : vector<128xf32> to vector<1x128xf32>
    %359 = vector.broadcast %358 : vector<1x128xf32> to vector<2x128xf32>
    %360 = arith.addf %355, %359 : vector<2x128xf32>
    %c0_67 = arith.constant 0 : index
    %c0_68 = arith.constant 0 : index
    %361 = vector.load %arg6[%c0_67, %c0_68] : memref<2x128xf32, #tpu.memory_space<vmem>>, vector<2x128xf32>
    tpu.vector_store %arg6[%c0_67, %c0_68], %360 {strides = array<i32>} : memref<2x128xf32, #tpu.memory_space<vmem>>, vector<2x128xf32>,
    return
  }
  func.func @transform_0(%arg0: i32) -> (i32, i32) {
    %c0_i32 = arith.constant 0 : i32
    %c0_i32_0 = arith.constant 0 : i32
    return %arg0, %c0_i32 : i32, i32
  }
  func.func @transform_1(%arg0: i32) -> (i32, i32, i32) {
    %c0_i32 = arith.constant 0 : i32
    %c0_i32_0 = arith.constant 0 : i32
    %c0_i32_1 = arith.constant 0 : i32
    return %arg0, %c0_i32, %c0_i32_0 : i32, i32, i32
  }
  func.func @transform_2(%arg0: i32) -> (i32, i32, i32) {
    %c0_i32 = arith.constant 0 : i32
    %c0_i32_0 = arith.constant 0 : i32
    %c0_i32_1 = arith.constant 0 : i32
    return %arg0, %c0_i32, %c0_i32_0 : i32, i32, i32
  }
  func.func @transform_3(%arg0: i32) -> (i32, i32) {
    %c0_i32 = arith.constant 0 : i32
    %c0_i32_0 = arith.constant 0 : i32
    %c0_i32_1 = arith.constant 0 : i32
    return %c0_i32, %c0_i32_0 : i32, i32
  }
  func.func @transform_4(%arg0: i32) -> (i32, i32) {
    %c0_i32 = arith.constant 0 : i32
    %c0_i32_0 = arith.constant 0 : i32
    %c0_i32_1 = arith.constant 0 : i32
    return %c0_i32, %c0_i32_0 : i32, i32
  }
  func.func @transform_5(%arg0: i32) -> (i32, i32) {
    %c0_i32 = arith.constant 0 : i32
    %c0_i32_0 = arith.constant 0 : i32
    return %arg0, %c0_i32 : i32, i32
  }
}

</mosaic_0001>

<llo_original>
// kernel: mac_forward.1
$region0: #{mac_forward.1}
  #allocation0 [shape = 'u32[]', space=smem, size = 0x4, offset = 0x4, fixed_abs, tag = 'smem constant byte address 0x4 - core index']
  #allocation1 [shape = 'u32[72,128]{1,0:T(1,128)}', space=vmem, size = 0x9000, scoped, tag = 'internal scratch']
  %s0 = inlined_call_operand.vmem [shape: f32[2,64], index: 0, kind: input, shape index: {}]
  %s1 = inlined_call_operand.vmem [shape: f32[2,32,196], index: 1, kind: input, shape index: {}]
  %s2 = inlined_call_operand.vmem [shape: f32[2,8,32], index: 2, kind: input, shape index: {}]
  %s3 = inlined_call_operand.vmem [shape: f32[672,128], index: 3, kind: input, shape index: {}]
  %s4 = inlined_call_operand.vmem [shape: f32[26,128], index: 4, kind: input, shape index: {}]
  %s5 = inlined_call_operand.hbm [shape: f32[2,128], index: 5, kind: output, shape index: {}]
  %s6 = sld [smem:[#allocation0]]
  $region30: #{mac_forward.1} parent=0
    _
  %s8 = ssub.s32 1, %s6
  %s9 = scalar_select 0, %s8, %s6
  $region1: #{mac_forward.1} parent=0
    #allocation2 [shape = 'u8[1024]{0}', space=vmem, size = 0x400, scoped, tag = 'output window, operand 0, single buffered']
    #allocation3 [shape = 's32[1]{0}', space=sflag, size = 0x4, scoped, tag = 'scoped memory for mac_forward.1']
    %10 = vsyncpa [#allocation3], 0
    // Predicated region
    $region2: #{mac_forward.1} parent=1 // pred_check
      _
    $region3: #{mac_forward.1} parent=1 // pred_check_branch
      %12 = sbr.rel (0) target = $region5
    $region4: #{mac_forward.1} parent=1 // pred_region
      _
    $region5: #{mac_forward.1} parent=1 // pred_fallthru
      _
    // Predicated region
    $region6: #{mac_forward.1} parent=1 // pred_check
      _
    $region7: #{mac_forward.1} parent=1 // pred_check_branch
      %14 = sbr.rel (0) target = $region9
    $region8: #{mac_forward.1} parent=1 // pred_region
      _
    $region9: #{mac_forward.1} parent=1 // pred_fallthru
      _
    // Predicated region
    $region10: #{mac_forward.1} parent=1 // pred_check
      _
    $region11: #{mac_forward.1} parent=1 // pred_check_branch
      %16 = sbr.rel (0) target = $region13
    $region12: #{mac_forward.1} parent=1 // pred_region
      _
    $region13: #{mac_forward.1} parent=1 // pred_fallthru
      _
    // Predicated region
    $region14: #{mac_forward.1} parent=1 // pred_check
      _
    $region15: #{mac_forward.1} parent=1 // pred_check_branch
      %18 = sbr.rel (0) target = $region17
    $region16: #{mac_forward.1} parent=1 // pred_region
      _
    $region17: #{mac_forward.1} parent=1 // pred_fallthru
      _
    // Predicated region
    $region18: #{mac_forward.1} parent=1 // pred_check
      _
    $region19: #{mac_forward.1} parent=1 // pred_check_branch
      %20 = sbr.rel (0) target = $region21
    $region20: #{mac_forward.1} parent=1 // pred_region
      _
    $region21: #{mac_forward.1} parent=1 // pred_fallthru
      _
    %v21 = vld [vmem:[%s0] sm:$0x3]
    %v22 = vld [vmem:[%s1] sm:$0xff]
    %v23 = vld [vmem:[%s1 + $0x8] sm:$0xff]
    %v24 = vld [vmem:[%s1 + $0x10] sm:$0xff]
    %v25 = vld [vmem:[%s1 + $0x18] sm:$0xff]
    %v26 = vld [vmem:[%s1 + $0x20] sm:$0xff]
    %v27 = vld [vmem:[%s1 + $0x28] sm:$0xff]
    %v28 = vld [vmem:[%s1 + $0x30] sm:$0xff]
    %v29 = vld [vmem:[%s1 + $0x38] sm:$0xff]
    %v30 = vld [vmem:[%s1 + $0x40] sm:$0xff]
    %v31 = vld [vmem:[%s1 + $0x48] sm:$0xff]
    %v32 = vld [vmem:[%s1 + $0x50] sm:$0xff]
    %v33 = vld [vmem:[%s1 + $0x58] sm:$0xff]
    %v34 = vld [vmem:[%s1 + $0x60] sm:$0xff]
    %v35 = vld [vmem:[%s1 + $0x68] sm:$0xff]
    %v36 = vld [vmem:[%s1 + $0x70] sm:$0xff]
    %v37 = vld [vmem:[%s1 + $0x78] sm:$0xff]
    %v38 = vld [vmem:[%s2] sm:$0xff]
    %v39 = vld [vmem:[%s2 + $0x8] sm:$0xff]
    %v40 = vld [vmem:[%s4] sm:$0xff]
    %v41 = vld [vmem:[%s4 + $0x8] sm:$0xff]
    %v42 = vld [vmem:[%s4 + $0x10] sm:$0xff]
    %v43 = vld [vmem:[%s4 + $0x18] sm:$0x3]
    %v44 = vperm.slane %v40, 0
    %v45 = vperm.slane %v40, 1
    %v46 = vld [vmem:[%s3] sm:$0xff]
    %v47 = vld [vmem:[%s3 + $0x8] sm:$0xff]
    %v48 = vld [vmem:[%s3 + $0x10] sm:$0xff]
    %v49 = vld [vmem:[%s3 + $0x18] sm:$0xff]
    %v50 = vld [vmem:[%s3 + $0x20] sm:$0xff]
    %v51 = vld [vmem:[%s3 + $0x28] sm:$0xff]
    %v52 = vld [vmem:[%s3 + $0x30] sm:$0xff]
    %v53 = vld [vmem:[%s3 + $0x38] sm:$0xff]
    %vm54 = vcmask 523264
    %v56 = vsel %vm54, %v21, 0
    %58 = vmatpush.msra.mxu0 0.0
    %59 = vmatpush.msra.mxu0 0.0
    %60 = vmatpush.msra.mxu0 0.0
    %61 = vmatpush.msra.mxu0 0.0
    %62 = vmatpush.msra.mxu0 0.0
    %63 = vmatpush.msra.mxu0 0.0
    %64 = vmatpush.msra.mxu0 0.0
    %65 = vmatpush.msra.mxu0 0.0
    %66 = vmatpush.msra.mxu0 %v53
    %67 = vmatpush.msra.mxu0 %v52
    %68 = vmatpush.msra.mxu0 %v51
    %69 = vmatpush.msra.mxu0 %v50
    %70 = vmatpush.msra.mxu0 %v49
    %71 = vmatpush.msra.mxu0 %v48
    %72 = vmatpush.msra.mxu0 %v47
    %73 = vmatpush.msra.mxu0 %v46
    %74 = vmatmul.f32.gmra.mxu0 %v56
    %v75 = vpop.f32.mrf.mxu0
    %v76 = vadd.f32 0.0, %v75
    %77 = vdwg.mxu0
    %v78 = vperm.slane %v40, 4
    %v79 = vadd.f32 %v76, %v78
    %v81 = vrot.slane %v79, 6
    %vm83 = vcmask 1041408
    %v84 = vsel %vm83, %v44, %v81
    %vm85 = vcmask 1043456
    %v86 = vsel %vm85, %v84, %v45
    %v87 = vld [vmem:[%s3 + $0x40] sm:$0xff]
    %v88 = vld [vmem:[%s3 + $0x48] sm:$0xff]
    %v89 = vld [vmem:[%s3 + $0x50] sm:$0xff]
    %v90 = vld [vmem:[%s3 + $0x58] sm:$0xff]
    %vm91 = vcmask 261120
    %v93 = vsel %vm91, %v86, 0
    %95 = vmatpush.msra.mxu0 0.0
    %96 = vmatpush.msra.mxu0 0.0
    %97 = vmatpush.msra.mxu0 0.0
    %98 = vmatpush.msra.mxu0 0.0
    %99 = vmatpush.msra.mxu0 0.0
    %100 = vmatpush.msra.mxu0 0.0
    %101 = vmatpush.msra.mxu0 0.0
    %102 = vmatpush.msra.mxu0 0.0
    %103 = vmatpush.msra.mxu0 0.0
    %104 = vmatpush.msra.mxu0 0.0
    %105 = vmatpush.msra.mxu0 0.0
    %106 = vmatpush.msra.mxu0 0.0
    %107 = vmatpush.msra.mxu0 %v90
    %108 = vmatpush.msra.mxu0 %v89
    %109 = vmatpush.msra.mxu0 %v88
    %110 = vmatpush.msra.mxu0 %v87
    %111 = vmatmul.f32.gmra.mxu0 %v93
    %v112 = vpop.f32.mrf.mxu0
    %v113 = vadd.f32 0.0, %v112
    %114 = vdwg.mxu0
    %v116 = vrot.slane %v113, 2
    %117 = vrot.lane.b32.xlu0 %v116, 96
    %v118 = vpop.permute.xlu0 %117
    %v120 = vadd.f32 %v113, %v118
    %v121 = vperm.slane %v40, 5
    %v122 = vadd.f32 %v120, %v121
    %v123 = vperm.slane %v40, 7
    %125 = vrot.lane.b32.xlu0 %v123, 64
    %v126 = vpop.permute.xlu0 %125
    %v128 = vadd.f32 %v113, %v126
    %v129 = vperm.slane %v40, 6
    %v130 = vmul.f32 %v122, %v129
    %v132 = vrot.slane %v130, 1
    %v133 = vperm.slane %v130, 0
    %v134 = vperm.slane %v132, 0
    %v137 = vmul.f32 %v133, %v38
    %v138 = vmul.f32 %v134, %v39
    %v139 = vsel %vm91, %v137, 0.0
    %140 = vadd.xlane.f32.xlu0 %v139
    %v141 = vpop.xlane.xlu0 %140
    %v142 = vsel %vm91, %v138, 0.0
    %143 = vadd.xlane.f32.xlu0 %v142
    %v144 = vpop.xlane.xlu0 %143
    %v147 = vlaneseq
    %v148 = vand.u32 %v147, 127
    %v149 = vperm.slane %v141, %v148
    %v150 = vperm.slane %v144, %v148
    %vm151 = vcmask 1041409
    %v152 = vsel %vm151, %v150, %v149
    %vm154 = vcmask 58368
    %v155 = vsel %vm154, %v152, -inf
    %156 = vmax.xlane.f32.xlu0 %v155
    %v157 = vpop.xlane.xlu0 %156
    %v159 = vperm.slane %v157, 0
    %v160 = vperm.slane %v157, 1
    %v163 = vsub.f32 %v141, %v159
    %v164 = vsub.f32 %v144, %v160
    %v165 = vmul.f32 %v163, 1.442695
    %v166 = vpow.pop %v165
    %v167 = vmul.f32 %v164, 1.442695
    %v168 = vpow.pop %v167
    %171 = vset.pattern.permute.xlu0 0
    %172 = vperm.xlu0 %171, %v166
    %v173 = vpop.permute.xlu0 %172
    %174 = vset.pattern.permute.xlu0 0
    %175 = vperm.xlu0 %174, %v168
    %v176 = vpop.permute.xlu0 %175
    %v177 = vperm.slane %v173, %v148
    %v178 = vperm.slane %v176, %v148
    %v179 = vsel %vm151, %v178, %v177
    %v181 = vsel %vm154, %v179, 0.0
    %182 = vadd.xlane.f32.xlu0 %v181
    %v183 = vpop.xlane.xlu0 %182
    %v184 = vrcp.pop %v183
    %v186 = vperm.slane %v184, 0
    %v187 = vperm.slane %v184, 1
    %v190 = vmul.f32 %v166, %v186
    %v191 = vmul.f32 %v168, %v187
    %193 = vset.pattern.permute.xlu0 0
    %194 = vperm.xlu0 %193, %v190
    %v195 = vpop.permute.xlu0 %194
    %198 = vset.pattern.permute.xlu0 0
    %199 = vperm.xlu0 %198, %v191
    %v200 = vpop.permute.xlu0 %199
    %v202 = vmul.f32 %v195, %v38
    %v203 = vmul.f32 %v200, %v39
    %v204 = vsel %vm91, %v202, 0.0
    %v205 = vrot.slane %v204, 4
    %v206 = vadd.f32 %v204, %v205
    %v207 = vrot.slane %v206, 2
    %v208 = vadd.f32 %v206, %v207
    %v209 = vrot.slane %v208, 1
    %v210 = vadd.f32 %v208, %v209
    %v211 = vsel %vm91, %v203, 0.0
    %v212 = vrot.slane %v211, 4
    %v213 = vadd.f32 %v211, %v212
    %v214 = vrot.slane %v213, 2
    %v215 = vadd.f32 %v213, %v214
    %v216 = vrot.slane %v215, 1
    %v217 = vadd.f32 %v215, %v216
    %v218 = vperm.slane %v41, 0
    %v219 = vmul.f32 %v210, %v218
    %v220 = vmul.f32 %v217, %v218
    %v221 = vld [vmem:[%s3 + $0x60] sm:$0xff]
    %v222 = vld [vmem:[%s3 + $0x68] sm:$0xff]
    %v223 = vld [vmem:[%s3 + $0x70] sm:$0xff]
    %v224 = vld [vmem:[%s3 + $0x78] sm:$0xff]
    %v227 = vrot.slane %v220, 7
    %v228 = vsel %vm151, %v227, %v219
    %v229 = vsel %vm91, %v228, 0
    %231 = vmatpush.msra.mxu0 0.0
    %232 = vmatpush.msra.mxu0 0.0
    %233 = vmatpush.msra.mxu0 0.0
    %234 = vmatpush.msra.mxu0 0.0
    %235 = vmatpush.msra.mxu0 0.0
    %236 = vmatpush.msra.mxu0 0.0
    %237 = vmatpush.msra.mxu0 0.0
    %238 = vmatpush.msra.mxu0 0.0
    %239 = vmatpush.msra.mxu0 0.0
    %240 = vmatpush.msra.mxu0 0.0
    %241 = vmatpush.msra.mxu0 0.0
    %242 = vmatpush.msra.mxu0 0.0
    %243 = vmatpush.msra.mxu0 %v224
    %244 = vmatpush.msra.mxu0 %v223
    %245 = vmatpush.msra.mxu0 %v222
    %246 = vmatpush.msra.mxu0 %v221
    %247 = vmatmul.f32.gmra.mxu0 %v229
    %v248 = vpop.f32.mrf.mxu0
    %v249 = vadd.f32 0.0, %v248
    %250 = vdwg.mxu0
    %v252 = vrot.slane %v249, 4
    %253 = vrot.lane.b32.xlu0 %v252, 64
    %v254 = vpop.permute.xlu0 %253
    %v256 = vmul.f32 %v128, %v254
    %257 = vrot.lane.b32.xlu0 %v252, 32
    %v258 = vpop.permute.xlu0 %257
    %v260 = vadd.f32 %v256, %v258
    %v261 = vperm.slane %v260, 4
    %v262 = vlaneseq
    %v263 = vshrl.u32 %v262, 7
    %v264 = vadd.s32 %v263, 64
    %265 = vset.pattern.permute.xlu0 %v264
    %266 = vperm.xlu0 %265, %v261
    %v267 = vpop.permute.xlu0 %266
    %v268 = vlaneseq
    %v269 = vshrl.u32 %v268, 7
    %v270 = vadd.s32 %v269, 72
    %271 = vset.pattern.permute.xlu0 %v270
    %272 = vperm.xlu0 %271, %v261
    %v273 = vpop.permute.xlu0 %272
    %v274 = vlaneseq
    %v275 = vshrl.u32 %v274, 7
    %v276 = vadd.s32 %v275, 80
    %277 = vset.pattern.permute.xlu0 %v276
    %278 = vperm.xlu0 %277, %v261
    %v279 = vpop.permute.xlu0 %278
    %v280 = vlaneseq
    %v281 = vshrl.u32 %v280, 7
    %v282 = vadd.s32 %v281, 88
    %283 = vset.pattern.permute.xlu0 %v282
    %284 = vperm.xlu0 %283, %v261
    %v285 = vpop.permute.xlu0 %284
    %v286 = vperm.slane %v260, 5
    %v287 = vlaneseq
    %v288 = vshrl.u32 %v287, 7
    %v289 = vadd.s32 %v288, 64
    %290 = vset.pattern.permute.xlu0 %v289
    %291 = vperm.xlu0 %290, %v286
    %v292 = vpop.permute.xlu0 %291
    %v293 = vlaneseq
    %v294 = vshrl.u32 %v293, 7
    %v295 = vadd.s32 %v294, 72
    %296 = vset.pattern.permute.xlu0 %v295
    %297 = vperm.xlu0 %296, %v286
    %v298 = vpop.permute.xlu0 %297
    %v299 = vlaneseq
    %v300 = vshrl.u32 %v299, 7
    %v301 = vadd.s32 %v300, 80
    %302 = vset.pattern.permute.xlu0 %v301
    %303 = vperm.xlu0 %302, %v286
    %v304 = vpop.permute.xlu0 %303
    %v305 = vlaneseq
    %v306 = vshrl.u32 %v305, 7
    %v307 = vadd.s32 %v306, 88
    %308 = vset.pattern.permute.xlu0 %v307
    %309 = vperm.xlu0 %308, %v286
    %v310 = vpop.permute.xlu0 %309
    %v311 = vmul.f32 %v267, %v22
    %v312 = vmul.f32 %v267, %v23
    %v313 = vmul.f32 %v273, %v24
    %v314 = vmul.f32 %v273, %v25
    %v315 = vmul.f32 %v279, %v26
    %v316 = vmul.f32 %v279, %v27
    %v317 = vmul.f32 %v285, %v28
    %v318 = vmul.f32 %v285, %v29
    %v319 = vmul.f32 %v292, %v30
    %v320 = vmul.f32 %v292, %v31
    %v321 = vmul.f32 %v298, %v32
    %v322 = vmul.f32 %v298, %v33
    %v323 = vmul.f32 %v304, %v34
    %v324 = vmul.f32 %v304, %v35
    %v325 = vmul.f32 %v310, %v36
    %v326 = vmul.f32 %v310, %v37
    %v327 = vadd.f32 %v311, %v313
    %v328 = vadd.f32 %v327, %v315
    %v329 = vadd.f32 %v328, %v317
    %v330 = vrot.slane %v329, 4
    %v331 = vadd.f32 %v329, %v330
    %v332 = vrot.slane %v331, 2
    %v333 = vadd.f32 %v331, %v332
    %v334 = vrot.slane %v333, 1
    %v335 = vadd.f32 %v333, %v334
    %vm336 = vcmask 556032
    %v337 = vsel %vm336, %v312, 0.0
    %v338 = vsel %vm336, %v314, 0.0
    %v339 = vadd.f32 %v337, %v338
    %v340 = vsel %vm336, %v316, 0.0
    %v341 = vadd.f32 %v339, %v340
    %v342 = vsel %vm336, %v318, 0.0
    %v343 = vadd.f32 %v341, %v342
    %v344 = vrot.slane %v343, 4
    %v345 = vadd.f32 %v343, %v344
    %v346 = vrot.slane %v345, 2
    %v347 = vadd.f32 %v345, %v346
    %v348 = vrot.slane %v347, 1
    %v349 = vadd.f32 %v347, %v348
    %v350 = vadd.f32 %v319, %v321
    %v351 = vadd.f32 %v350, %v323
    %v352 = vadd.f32 %v351, %v325
    %v353 = vrot.slane %v352, 4
    %v354 = vadd.f32 %v352, %v353
    %v355 = vrot.slane %v354, 2
    %v356 = vadd.f32 %v354, %v355
    %v357 = vrot.slane %v356, 1
    %v358 = vadd.f32 %v356, %v357
    %v359 = vsel %vm336, %v320, 0.0
    %v360 = vsel %vm336, %v322, 0.0
    %v361 = vadd.f32 %v359, %v360
    %v362 = vsel %vm336, %v324, 0.0
    %v363 = vadd.f32 %v361, %v362
    %v364 = vsel %vm336, %v326, 0.0
    %v365 = vadd.f32 %v363, %v364
    %v366 = vrot.slane %v365, 4
    %v367 = vadd.f32 %v365, %v366
    %v368 = vrot.slane %v367, 2
    %v369 = vadd.f32 %v367, %v368
    %v370 = vrot.slane %v369, 1
    %v371 = vadd.f32 %v369, %v370
    %v376 = vsel %vm151, %v358, %v335
    %v377 = vsel %vm151, %v371, %v349
    %v380 = vsel %vm83, %v376, -inf
    %vm381 = vcmask 549888
    %v382 = vsel %vm381, %v377, -inf
    %v383 = vmax.f32 %v380, %v382
    %384 = vmax.xlane.f32.xlu0 %v383
    %v385 = vpop.xlane.xlu0 %384
    %v387 = vrot.slane %v385, 1
    %v390 = vsub.f32 %v335, %v385
    %v391 = vsub.f32 %v349, %v385
    %v392 = vsub.f32 %v358, %v387
    %v393 = vsub.f32 %v371, %v387
    %v394 = vmul.f32 %v390, 1.442695
    %v395 = vpow.pop %v394
    %v396 = vmul.f32 %v391, 1.442695
    %v397 = vpow.pop %v396
    %v398 = vmul.f32 %v392, 1.442695
    %v399 = vpow.pop %v398
    %v400 = vmul.f32 %v393, 1.442695
    %v401 = vpow.pop %v400
    %v406 = vrot.slane %v399, 7
    %v407 = vsel %vm151, %v406, %v395
    %v408 = vrot.slane %v401, 7
    %v409 = vsel %vm151, %v408, %v397
    %v412 = vsel %vm83, %v407, 0.0
    %v413 = vsel %vm381, %v409, 0.0
    %v414 = vadd.f32 %v412, %v413
    %415 = vadd.xlane.f32.xlu0 %v414
    %v416 = vpop.xlane.xlu0 %415
    %v417 = vrcp.pop %v416
    %v419 = vrot.slane %v417, 1
    %v422 = vmul.f32 %v395, %v417
    %v423 = vmul.f32 %v397, %v417
    %v424 = vmul.f32 %v399, %v419
    %v425 = vmul.f32 %v401, %v419
    %v426 = vperm.slane %v422, 0
    %v427 = vperm.slane %v423, 0
    %v428 = vperm.slane %v424, 0
    %v429 = vperm.slane %v425, 0
    %v430 = vmul.f32 %v426, %v22
    %v431 = vmul.f32 %v427, %v23
    %v432 = vmul.f32 %v426, %v24
    %v433 = vmul.f32 %v427, %v25
    %v434 = vmul.f32 %v426, %v26
    %v435 = vmul.f32 %v427, %v27
    %v436 = vmul.f32 %v426, %v28
    %v437 = vmul.f32 %v427, %v29
    %v438 = vmul.f32 %v428, %v30
    %v439 = vmul.f32 %v429, %v31
    %v440 = vmul.f32 %v428, %v32
    %v441 = vmul.f32 %v429, %v33
    %v442 = vmul.f32 %v428, %v34
    %v443 = vmul.f32 %v429, %v35
    %v444 = vmul.f32 %v428, %v36
    %v445 = vmul.f32 %v429, %v37
    %v446 = vsel %vm336, %v431, 0.0
    %v447 = vadd.f32 %v430, %v446
    %448 = vadd.xlane.f32.xlu0 %v447
    %v449 = vpop.xlane.xlu0 %448
    %v450 = vsel %vm336, %v433, 0.0
    %v451 = vadd.f32 %v432, %v450
    %452 = vadd.xlane.f32.xlu0 %v451
    %v453 = vpop.xlane.xlu0 %452
    %v454 = vsel %vm336, %v435, 0.0
    %v455 = vadd.f32 %v434, %v454
    %456 = vadd.xlane.f32.xlu0 %v455
    %v457 = vpop.xlane.xlu0 %456
    %v458 = vsel %vm336, %v437, 0.0
    %v459 = vadd.f32 %v436, %v458
    %460 = vadd.xlane.f32.xlu0 %v459
    %v461 = vpop.xlane.xlu0 %460
    %v462 = vsel %vm336, %v439, 0.0
    %v463 = vadd.f32 %v438, %v462
    %464 = vadd.xlane.f32.xlu0 %v463
    %v465 = vpop.xlane.xlu0 %464
    %v466 = vsel %vm336, %v441, 0.0
    %v467 = vadd.f32 %v440, %v466
    %468 = vadd.xlane.f32.xlu0 %v467
    %v469 = vpop.xlane.xlu0 %468
    %v470 = vsel %vm336, %v443, 0.0
    %v471 = vadd.f32 %v442, %v470
    %472 = vadd.xlane.f32.xlu0 %v471
    %v473 = vpop.xlane.xlu0 %472
    %v474 = vsel %vm336, %v445, 0.0
    %v475 = vadd.f32 %v444, %v474
    %476 = vadd.xlane.f32.xlu0 %v475
    %v477 = vpop.xlane.xlu0 %476
    %v486 = vperm.slane %v449, %v148
    %v487 = vadd.s32 %v148, 4294967288
    %v488 = vperm.slane %v453, %v487
    %vm489 = vcmask 130112
    %v490 = vsel %vm489, %v488, %v486
    %v491 = vadd.s32 %v148, 4294967280
    %v492 = vperm.slane %v457, %v491
    %vm493 = vcmask 195712
    %v494 = vsel %vm493, %v492, %v490
    %v495 = vadd.s32 %v148, 4294967272
    %v496 = vperm.slane %v461, %v495
    %vm497 = vcmask 261312
    %v498 = vsel %vm497, %v496, %v494
    %v499 = vperm.slane %v465, %v148
    %v500 = vperm.slane %v469, %v487
    %v501 = vsel %vm489, %v500, %v499
    %v502 = vperm.slane %v473, %v491
    %v503 = vsel %vm493, %v502, %v501
    %v504 = vperm.slane %v477, %v495
    %v505 = vsel %vm497, %v504, %v503
    %v506 = vsel %vm151, %v505, %v498
    %509 = vrot.lane.b32.xlu0 %v45, 32
    %v510 = vpop.permute.xlu0 %509
    %v512 = vsel %vm91, %v506, %v510
    %v513 = vld [vmem:[%s3 + $0x80] sm:$0xff]
    %v514 = vld [vmem:[%s3 + $0x88] sm:$0xff]
    %v515 = vld [vmem:[%s3 + $0x90] sm:$0xff]
    %v516 = vld [vmem:[%s3 + $0x98] sm:$0xff]
    %v517 = vld [vmem:[%s3 + $0xa0] sm:$0xff]
    %v518 = vld [vmem:[%s3 + $0xa8] sm:$0xff]
    %v519 = vld [vmem:[%s3 + $0xb0] sm:$0xff]
    %v520 = vld [vmem:[%s3 + $0xb8] sm:$0xff]
    %v522 = vsel %vm54, %v512, 0
    %524 = vmatpush.msra.mxu0 0.0
    %525 = vmatpush.msra.mxu0 0.0
    %526 = vmatpush.msra.mxu0 0.0
    %527 = vmatpush.msra.mxu0 0.0
    %528 = vmatpush.msra.mxu0 0.0
    %529 = vmatpush.msra.mxu0 0.0
    %530 = vmatpush.msra.mxu0 0.0
    %531 = vmatpush.msra.mxu0 0.0
    %532 = vmatpush.msra.mxu0 %v520
    %533 = vmatpush.msra.mxu0 %v519
    %534 = vmatpush.msra.mxu0 %v518
    %535 = vmatpush.msra.mxu0 %v517
    %536 = vmatpush.msra.mxu0 %v516
    %537 = vmatpush.msra.mxu0 %v515
    %538 = vmatpush.msra.mxu0 %v514
    %539 = vmatpush.msra.mxu0 %v513
    %540 = vmatmul.f32.gmra.mxu0 %v522
    %v541 = vpop.f32.mrf.mxu0
    %v542 = vadd.f32 0.0, %v541
    %543 = vdwg.mxu0
    %v544 = vperm.slane %v41, 1
    %v545 = vadd.f32 %v542, %v544
    %v546 = vperm.slane %v41, 2
    %v547 = vmul.f32 %v210, %v546
    %v548 = vmul.f32 %v217, %v546
    %v551 = vrot.slane %v548, 7
    %v552 = vsel %vm151, %v551, %v547
    %vm554 = vcmask 254976
    %v555 = vsel %vm554, %v552, 0.0
    %556 = vadd.xlane.f32.xlu0 %v555
    %v557 = vpop.xlane.xlu0 %556
    %v558 = vperm.slane %v43, 1
    %v559 = vadd.f32 %v557, %v558
    %v560 = vxor.u32 %v559, 2147483648
    %v561 = vmul.f32 %v560, 1.442695
    %v562 = vpow.pop %v561
    %v563 = vadd.f32 %v562, 1.0
    %v564 = vrcp.pop %v563
    %v565 = vmul.f32 %v563, %v564
    %v566 = vsub.f32 1.0, %v565
    %v567 = vmul.f32 %v564, %v566
    %v568 = vadd.f32 %v564, %v567
    %vm569 = vweird.f32 %v563
    %vm570 = vweird.f32 %v564
    %vm571 = vmor %vm569, %vm570
    %v572 = vsel %vm571, %v564, %v568
    %v573 = vand.u32 2147483647, %v563
    %vm574 = vcmp.eq.f32.partialorder %v573, 8.507059e+37
    %v575 = vand.u32 %v563, 2147483648
    %v576 = vor.u32 1.1754944e-38, %v575
    %v577 = vsel %vm574, %v576, %v572
    %v578 = vmul.f32 1.0, %v577
    %580 = vset.pattern.permute.xlu0 1
    %581 = vperm.xlu0 %580, %v578
    %v582 = vpop.permute.xlu0 %581
    %v584 = vmul.f32 %v45, %v582
    %v585 = vsub.f32 1.0, %v578
    %587 = vset.pattern.permute.xlu0 1
    %588 = vperm.xlu0 %587, %v585
    %v589 = vpop.permute.xlu0 %588
    %v591 = vmul.f32 %v545, %v589
    %v592 = vadd.f32 %v584, %v591
    %v593 = vperm.slane %v41, 3
    %595 = vrot.lane.b32.xlu0 %v593, 32
    %v596 = vpop.permute.xlu0 %595
    %v598 = vadd.f32 %v76, %v596
    %v601 = vsel %vm151, %v217, %v210
    %v604 = vrot.slane %v598, 6
    %605 = vrot.lane.b32.xlu0 %v604, 96
    %v606 = vpop.permute.xlu0 %605
    %v609 = vrot.slane %v592, 4
    %v611 = vsel %vm83, %v601, %v606
    %v612 = vsel %vm85, %v611, %v609
    %v613 = vld [vmem:[%s3 + $0xc0] sm:$0xff]
    %v614 = vld [vmem:[%s3 + $0xc8] sm:$0xff]
    %v615 = vld [vmem:[%s3 + $0xd0] sm:$0xff]
    %v616 = vld [vmem:[%s3 + $0xd8] sm:$0xff]
    %v618 = vsel %vm91, %v612, 0
    %620 = vmatpush.msra.mxu0 0.0
    %621 = vmatpush.msra.mxu0 0.0
    %622 = vmatpush.msra.mxu0 0.0
    %623 = vmatpush.msra.mxu0 0.0
    %624 = vmatpush.msra.mxu0 0.0
    %625 = vmatpush.msra.mxu0 0.0
    %626 = vmatpush.msra.mxu0 0.0
    %627 = vmatpush.msra.mxu0 0.0
    %628 = vmatpush.msra.mxu0 0.0
    %629 = vmatpush.msra.mxu0 0.0
    %630 = vmatpush.msra.mxu0 0.0
    %631 = vmatpush.msra.mxu0 0.0
    %632 = vmatpush.msra.mxu0 %v616
    %633 = vmatpush.msra.mxu0 %v615
    %634 = vmatpush.msra.mxu0 %v614
    %635 = vmatpush.msra.mxu0 %v613
    %636 = vmatmul.f32.gmra.mxu0 %v618
    %v637 = vpop.f32.mrf.mxu0
    %v638 = vadd.f32 0.0, %v637
    %639 = vdwg.mxu0
    %v641 = vrot.slane %v638, 2
    %642 = vrot.lane.b32.xlu0 %v641, 96
    %v643 = vpop.permute.xlu0 %642
    %v645 = vadd.f32 %v638, %v643
    %v646 = vperm.slane %v41, 4
    %v647 = vadd.f32 %v645, %v646
    %v648 = vperm.slane %v41, 6
    %650 = vrot.lane.b32.xlu0 %v648, 64
    %v651 = vpop.permute.xlu0 %650
    %v653 = vadd.f32 %v638, %v651
    %v654 = vperm.slane %v41, 5
    %v655 = vmul.f32 %v647, %v654
    %v657 = vrot.slane %v655, 1
    %v658 = vperm.slane %v655, 0
    %v659 = vperm.slane %v657, 0
    %v662 = vmul.f32 %v658, %v38
    %v663 = vmul.f32 %v659, %v39
    %v664 = vsel %vm91, %v662, 0.0
    %665 = vadd.xlane.f32.xlu0 %v664
    %v666 = vpop.xlane.xlu0 %665
    %v667 = vsel %vm91, %v663, 0.0
    %668 = vadd.xlane.f32.xlu0 %v667
    %v669 = vpop.xlane.xlu0 %668
    %v672 = vperm.slane %v666, %v148
    %v673 = vperm.slane %v669, %v148
    %v674 = vsel %vm151, %v673, %v672
    %v676 = vsel %vm154, %v674, -inf
    %677 = vmax.xlane.f32.xlu0 %v676
    %v678 = vpop.xlane.xlu0 %677
    %v680 = vperm.slane %v678, 0
    %v681 = vperm.slane %v678, 1
    %v684 = vsub.f32 %v666, %v680
    %v685 = vsub.f32 %v669, %v681
    %v686 = vmul.f32 %v684, 1.442695
    %v687 = vpow.pop %v686
    %v688 = vmul.f32 %v685, 1.442695
    %v689 = vpow.pop %v688
    %692 = vset.pattern.permute.xlu0 0
    %693 = vperm.xlu0 %692, %v687
    %v694 = vpop.permute.xlu0 %693
    %695 = vset.pattern.permute.xlu0 0
    %696 = vperm.xlu0 %695, %v689
    %v697 = vpop.permute.xlu0 %696
    %v698 = vperm.slane %v694, %v148
    %v699 = vperm.slane %v697, %v148
    %v700 = vsel %vm151, %v699, %v698
    %v702 = vsel %vm154, %v700, 0.0
    %703 = vadd.xlane.f32.xlu0 %v702
    %v704 = vpop.xlane.xlu0 %703
    %v705 = vrcp.pop %v704
    %v707 = vperm.slane %v705, 0
    %v708 = vperm.slane %v705, 1
    %v711 = vmul.f32 %v687, %v707
    %v712 = vmul.f32 %v689, %v708
    %714 = vset.pattern.permute.xlu0 0
    %715 = vperm.xlu0 %714, %v711
    %v716 = vpop.permute.xlu0 %715
    %719 = vset.pattern.permute.xlu0 0
    %720 = vperm.xlu0 %719, %v712
    %v721 = vpop.permute.xlu0 %720
    %v723 = vmul.f32 %v716, %v38
    %v724 = vmul.f32 %v721, %v39
    %v725 = vsel %vm91, %v723, 0.0
    %v726 = vrot.slane %v725, 4
    %v727 = vadd.f32 %v725, %v726
    %v728 = vrot.slane %v727, 2
    %v729 = vadd.f32 %v727, %v728
    %v730 = vrot.slane %v729, 1
    %v731 = vadd.f32 %v729, %v730
    %v732 = vsel %vm91, %v724, 0.0
    %v733 = vrot.slane %v732, 4
    %v734 = vadd.f32 %v732, %v733
    %v735 = vrot.slane %v734, 2
    %v736 = vadd.f32 %v734, %v735
    %v737 = vrot.slane %v736, 1
    %v738 = vadd.f32 %v736, %v737
    %v739 = vperm.slane %v41, 7
    %v740 = vmul.f32 %v731, %v739
    %v741 = vmul.f32 %v738, %v739
    %v742 = vld [vmem:[%s3 + $0xe0] sm:$0xff]
    %v743 = vld [vmem:[%s3 + $0xe8] sm:$0xff]
    %v744 = vld [vmem:[%s3 + $0xf0] sm:$0xff]
    %v745 = vld [vmem:[%s3 + $0xf8] sm:$0xff]
    %v748 = vrot.slane %v741, 7
    %v749 = vsel %vm151, %v748, %v740
    %v750 = vsel %vm91, %v749, 0
    %752 = vmatpush.msra.mxu0 0.0
    %753 = vmatpush.msra.mxu0 0.0
    %754 = vmatpush.msra.mxu0 0.0
    %755 = vmatpush.msra.mxu0 0.0
    %756 = vmatpush.msra.mxu0 0.0
    %757 = vmatpush.msra.mxu0 0.0
    %758 = vmatpush.msra.mxu0 0.0
    %759 = vmatpush.msra.mxu0 0.0
    %760 = vmatpush.msra.mxu0 0.0
    %761 = vmatpush.msra.mxu0 0.0
    %762 = vmatpush.msra.mxu0 0.0
    %763 = vmatpush.msra.mxu0 0.0
    %764 = vmatpush.msra.mxu0 %v745
    %765 = vmatpush.msra.mxu0 %v744
    %766 = vmatpush.msra.mxu0 %v743
    %767 = vmatpush.msra.mxu0 %v742
    %768 = vmatmul.f32.gmra.mxu0 %v750
    %v769 = vpop.f32.mrf.mxu0
    %v770 = vadd.f32 0.0, %v769
    %771 = vdwg.mxu0
    %v773 = vrot.slane %v770, 4
    %774 = vrot.lane.b32.xlu0 %v773, 64
    %v775 = vpop.permute.xlu0 %774
    %v777 = vmul.f32 %v653, %v775
    %778 = vrot.lane.b32.xlu0 %v773, 32
    %v779 = vpop.permute.xlu0 %778
    %v781 = vadd.f32 %v777, %v779
    %v782 = vperm.slane %v781, 4
    %v783 = vlaneseq
    %v784 = vshrl.u32 %v783, 7
    %v785 = vadd.s32 %v784, 64
    %786 = vset.pattern.permute.xlu0 %v785
    %787 = vperm.xlu0 %786, %v782
    %v788 = vpop.permute.xlu0 %787
    %v789 = vlaneseq
    %v790 = vshrl.u32 %v789, 7
    %v791 = vadd.s32 %v790, 72
    %792 = vset.pattern.permute.xlu0 %v791
    %793 = vperm.xlu0 %792, %v782
    %v794 = vpop.permute.xlu0 %793
    %v795 = vlaneseq
    %v796 = vshrl.u32 %v795, 7
    %v797 = vadd.s32 %v796, 80
    %798 = vset.pattern.permute.xlu0 %v797
    %799 = vperm.xlu0 %798, %v782
    %v800 = vpop.permute.xlu0 %799
    %v801 = vlaneseq
    %v802 = vshrl.u32 %v801, 7
    %v803 = vadd.s32 %v802, 88
    %804 = vset.pattern.permute.xlu0 %v803
    %805 = vperm.xlu0 %804, %v782
    %v806 = vpop.permute.xlu0 %805
    %v807 = vperm.slane %v781, 5
    %v808 = vlaneseq
    %v809 = vshrl.u32 %v808, 7
    %v810 = vadd.s32 %v809, 64
    %811 = vset.pattern.permute.xlu0 %v810
    %812 = vperm.xlu0 %811, %v807
    %v813 = vpop.permute.xlu0 %812
    %v814 = vlaneseq
    %v815 = vshrl.u32 %v814, 7
    %v816 = vadd.s32 %v815, 72
    %817 = vset.pattern.permute.xlu0 %v816
    %818 = vperm.xlu0 %817, %v807
    %v819 = vpop.permute.xlu0 %818
    %v820 = vlaneseq
    %v821 = vshrl.u32 %v820, 7
    %v822 = vadd.s32 %v821, 80
    %823 = vset.pattern.permute.xlu0 %v822
    %824 = vperm.xlu0 %823, %v807
    %v825 = vpop.permute.xlu0 %824
    %v826 = vlaneseq
    %v827 = vshrl.u32 %v826, 7
    %v828 = vadd.s32 %v827, 88
    %829 = vset.pattern.permute.xlu0 %v828
    %830 = vperm.xlu0 %829, %v807
    %v831 = vpop.permute.xlu0 %830
    %v832 = vmul.f32 %v788, %v22
    %v833 = vmul.f32 %v788, %v23
    %v834 = vmul.f32 %v794, %v24
    %v835 = vmul.f32 %v794, %v25
    %v836 = vmul.f32 %v800, %v26
    %v837 = vmul.f32 %v800, %v27
    %v838 = vmul.f32 %v806, %v28
    %v839 = vmul.f32 %v806, %v29
    %v840 = vmul.f32 %v813, %v30
    %v841 = vmul.f32 %v813, %v31
    %v842 = vmul.f32 %v819, %v32
    %v843 = vmul.f32 %v819, %v33
    %v844 = vmul.f32 %v825, %v34
    %v845 = vmul.f32 %v825, %v35
    %v846 = vmul.f32 %v831, %v36
    %v847 = vmul.f32 %v831, %v37
    %v848 = vadd.f32 %v832, %v834
    %v849 = vadd.f32 %v848, %v836
    %v850 = vadd.f32 %v849, %v838
    %v851 = vrot.slane %v850, 4
    %v852 = vadd.f32 %v850, %v851
    %v853 = vrot.slane %v852, 2
    %v854 = vadd.f32 %v852, %v853
    %v855 = vrot.slane %v854, 1
    %v856 = vadd.f32 %v854, %v855
    %v857 = vsel %vm336, %v833, 0.0
    %v858 = vsel %vm336, %v835, 0.0
    %v859 = vadd.f32 %v857, %v858
    %v860 = vsel %vm336, %v837, 0.0
    %v861 = vadd.f32 %v859, %v860
    %v862 = vsel %vm336, %v839, 0.0
    %v863 = vadd.f32 %v861, %v862
    %v864 = vrot.slane %v863, 4
    %v865 = vadd.f32 %v863, %v864
    %v866 = vrot.slane %v865, 2
    %v867 = vadd.f32 %v865, %v866
    %v868 = vrot.slane %v867, 1
    %v869 = vadd.f32 %v867, %v868
    %v870 = vadd.f32 %v840, %v842
    %v871 = vadd.f32 %v870, %v844
    %v872 = vadd.f32 %v871, %v846
    %v873 = vrot.slane %v872, 4
    %v874 = vadd.f32 %v872, %v873
    %v875 = vrot.slane %v874, 2
    %v876 = vadd.f32 %v874, %v875
    %v877 = vrot.slane %v876, 1
    %v878 = vadd.f32 %v876, %v877
    %v879 = vsel %vm336, %v841, 0.0
    %v880 = vsel %vm336, %v843, 0.0
    %v881 = vadd.f32 %v879, %v880
    %v882 = vsel %vm336, %v845, 0.0
    %v883 = vadd.f32 %v881, %v882
    %v884 = vsel %vm336, %v847, 0.0
    %v885 = vadd.f32 %v883, %v884
    %v886 = vrot.slane %v885, 4
    %v887 = vadd.f32 %v885, %v886
    %v888 = vrot.slane %v887, 2
    %v889 = vadd.f32 %v887, %v888
    %v890 = vrot.slane %v889, 1
    %v891 = vadd.f32 %v889, %v890
    %v896 = vsel %vm151, %v878, %v856
    %v897 = vsel %vm151, %v891, %v869
    %v900 = vsel %vm83, %v896, -inf
    %v901 = vsel %vm381, %v897, -inf
    %v902 = vmax.f32 %v900, %v901
    %903 = vmax.xlane.f32.xlu0 %v902
    %v904 = vpop.xlane.xlu0 %903
    %v906 = vrot.slane %v904, 1
    %v909 = vsub.f32 %v856, %v904
    %v910 = vsub.f32 %v869, %v904
    %v911 = vsub.f32 %v878, %v906
    %v912 = vsub.f32 %v891, %v906
    %v913 = vmul.f32 %v909, 1.442695
    %v914 = vpow.pop %v913
    %v915 = vmul.f32 %v910, 1.442695
    %v916 = vpow.pop %v915
    %v917 = vmul.f32 %v911, 1.442695
    %v918 = vpow.pop %v917
    %v919 = vmul.f32 %v912, 1.442695
    %v920 = vpow.pop %v919
    %v925 = vrot.slane %v918, 7
    %v926 = vsel %vm151, %v925, %v914
    %v927 = vrot.slane %v920, 7
    %v928 = vsel %vm151, %v927, %v916
    %v931 = vsel %vm83, %v926, 0.0
    %v932 = vsel %vm381, %v928, 0.0
    %v933 = vadd.f32 %v931, %v932
    %934 = vadd.xlane.f32.xlu0 %v933
    %v935 = vpop.xlane.xlu0 %934
    %v936 = vrcp.pop %v935
    %v938 = vrot.slane %v936, 1
    %v941 = vmul.f32 %v914, %v936
    %v942 = vmul.f32 %v916, %v936
    %v943 = vmul.f32 %v918, %v938
    %v944 = vmul.f32 %v920, %v938
    %v945 = vperm.slane %v941, 0
    %v946 = vperm.slane %v942, 0
    %v947 = vperm.slane %v943, 0
    %v948 = vperm.slane %v944, 0
    %v949 = vmul.f32 %v945, %v22
    %v950 = vmul.f32 %v946, %v23
    %v951 = vmul.f32 %v945, %v24
    %v952 = vmul.f32 %v946, %v25
    %v953 = vmul.f32 %v945, %v26
    %v954 = vmul.f32 %v946, %v27
    %v955 = vmul.f32 %v945, %v28
    %v956 = vmul.f32 %v946, %v29
    %v957 = vmul.f32 %v947, %v30
    %v958 = vmul.f32 %v948, %v31
    %v959 = vmul.f32 %v947, %v32
    %v960 = vmul.f32 %v948, %v33
    %v961 = vmul.f32 %v947, %v34
    %v962 = vmul.f32 %v948, %v35
    %v963 = vmul.f32 %v947, %v36
    %v964 = vmul.f32 %v948, %v37
    %v965 = vsel %vm336, %v950, 0.0
    %v966 = vadd.f32 %v949, %v965
    %967 = vadd.xlane.f32.xlu0 %v966
    %v968 = vpop.xlane.xlu0 %967
    %v969 = vsel %vm336, %v952, 0.0
    %v970 = vadd.f32 %v951, %v969
    %971 = vadd.xlane.f32.xlu0 %v970
    %v972 = vpop.xlane.xlu0 %971
    %v973 = vsel %vm336, %v954, 0.0
    %v974 = vadd.f32 %v953, %v973
    %975 = vadd.xlane.f32.xlu0 %v974
    %v976 = vpop.xlane.xlu0 %975
    %v977 = vsel %vm336, %v956, 0.0
    %v978 = vadd.f32 %v955, %v977
    %979 = vadd.xlane.f32.xlu0 %v978
    %v980 = vpop.xlane.xlu0 %979
    %v981 = vsel %vm336, %v958, 0.0
    %v982 = vadd.f32 %v957, %v981
    %983 = vadd.xlane.f32.xlu0 %v982
    %v984 = vpop.xlane.xlu0 %983
    %v985 = vsel %vm336, %v960, 0.0
    %v986 = vadd.f32 %v959, %v985
    %987 = vadd.xlane.f32.xlu0 %v986
    %v988 = vpop.xlane.xlu0 %987
    %v989 = vsel %vm336, %v962, 0.0
    %v990 = vadd.f32 %v961, %v989
    %991 = vadd.xlane.f32.xlu0 %v990
    %v992 = vpop.xlane.xlu0 %991
    %v993 = vsel %vm336, %v964, 0.0
    %v994 = vadd.f32 %v963, %v993
    %995 = vadd.xlane.f32.xlu0 %v994
    %v996 = vpop.xlane.xlu0 %995
    %v1005 = vperm.slane %v968, %v148
    %v1006 = vperm.slane %v972, %v487
    %v1007 = vsel %vm489, %v1006, %v1005
    %v1008 = vperm.slane %v976, %v491
    %v1009 = vsel %vm493, %v1008, %v1007
    %v1010 = vperm.slane %v980, %v495
    %v1011 = vsel %vm497, %v1010, %v1009
    %v1012 = vperm.slane %v984, %v148
    %v1013 = vperm.slane %v988, %v487
    %v1014 = vsel %vm489, %v1013, %v1012
    %v1015 = vperm.slane %v992, %v491
    %v1016 = vsel %vm493, %v1015, %v1014
    %v1017 = vperm.slane %v996, %v495
    %v1018 = vsel %vm497, %v1017, %v1016
    %v1019 = vsel %vm151, %v1018, %v1011
    %1021 = vrot.lane.b32.xlu0 %v592, 32
    %v1022 = vpop.permute.xlu0 %1021
    %v1024 = vsel %vm91, %v1019, %v1022
    %v1025 = vld [vmem:[%s3 + $0x100] sm:$0xff]
    %v1026 = vld [vmem:[%s3 + $0x108] sm:$0xff]
    %v1027 = vld [vmem:[%s3 + $0x110] sm:$0xff]
    %v1028 = vld [vmem:[%s3 + $0x118] sm:$0xff]
    %v1029 = vld [vmem:[%s3 + $0x120] sm:$0xff]
    %v1030 = vld [vmem:[%s3 + $0x128] sm:$0xff]
    %v1031 = vld [vmem:[%s3 + $0x130] sm:$0xff]
    %v1032 = vld [vmem:[%s3 + $0x138] sm:$0xff]
    %v1034 = vsel %vm54, %v1024, 0
    %1036 = vmatpush.msra.mxu0 0.0
    %1037 = vmatpush.msra.mxu0 0.0
    %1038 = vmatpush.msra.mxu0 0.0
    %1039 = vmatpush.msra.mxu0 0.0
    %1040 = vmatpush.msra.mxu0 0.0
    %1041 = vmatpush.msra.mxu0 0.0
    %1042 = vmatpush.msra.mxu0 0.0
    %1043 = vmatpush.msra.mxu0 0.0
    %1044 = vmatpush.msra.mxu0 %v1032
    %1045 = vmatpush.msra.mxu0 %v1031
    %1046 = vmatpush.msra.mxu0 %v1030
    %1047 = vmatpush.msra.mxu0 %v1029
    %1048 = vmatpush.msra.mxu0 %v1028
    %1049 = vmatpush.msra.mxu0 %v1027
    %1050 = vmatpush.msra.mxu0 %v1026
    %1051 = vmatpush.msra.mxu0 %v1025
    %1052 = vmatmul.f32.gmra.mxu0 %v1034
    %v1053 = vpop.f32.mrf.mxu0
    %v1054 = vadd.f32 0.0, %v1053
    %1055 = vdwg.mxu0
    %v1056 = vperm.slane %v42, 0
    %v1057 = vadd.f32 %v1054, %v1056
    %v1058 = vperm.slane %v42, 1
    %v1059 = vmul.f32 %v731, %v1058
    %v1060 = vmul.f32 %v738, %v1058
    %v1063 = vrot.slane %v1060, 7
    %v1064 = vsel %vm151, %v1063, %v1059
    %v1066 = vsel %vm554, %v1064, 0.0
    %1067 = vadd.xlane.f32.xlu0 %v1066
    %v1068 = vpop.xlane.xlu0 %1067
    %v1069 = vadd.f32 %v1068, %v558
    %v1070 = vxor.u32 %v1069, 2147483648
    %v1071 = vmul.f32 %v1070, 1.442695
    %v1072 = vpow.pop %v1071
    %v1073 = vadd.f32 %v1072, 1.0
    %v1074 = vrcp.pop %v1073
    %v1075 = vmul.f32 %v1073, %v1074
    %v1076 = vsub.f32 1.0, %v1075
    %v1077 = vmul.f32 %v1074, %v1076
    %v1078 = vadd.f32 %v1074, %v1077
    %vm1079 = vweird.f32 %v1073
    %vm1080 = vweird.f32 %v1074
    %vm1081 = vmor %vm1079, %vm1080
    %v1082 = vsel %vm1081, %v1074, %v1078
    %v1083 = vand.u32 2147483647, %v1073
    %vm1084 = vcmp.eq.f32.partialorder %v1083, 8.507059e+37
    %v1085 = vand.u32 %v1073, 2147483648
    %v1086 = vor.u32 1.1754944e-38, %v1085
    %v1087 = vsel %vm1084, %v1086, %v1082
    %v1088 = vmul.f32 1.0, %v1087
    %1090 = vset.pattern.permute.xlu0 2
    %1091 = vperm.xlu0 %1090, %v1088
    %v1092 = vpop.permute.xlu0 %1091
    %v1094 = vmul.f32 %v592, %v1092
    %v1095 = vsub.f32 1.0, %v1088
    %1097 = vset.pattern.permute.xlu0 2
    %1098 = vperm.xlu0 %1097, %v1095
    %v1099 = vpop.permute.xlu0 %1098
    %v1101 = vmul.f32 %v1057, %v1099
    %v1102 = vadd.f32 %v1094, %v1101
    %v1103 = vperm.slane %v42, 2
    %1105 = vrot.lane.b32.xlu0 %v1103, 64
    %v1106 = vpop.permute.xlu0 %1105
    %v1108 = vadd.f32 %v76, %v1106
    %v1111 = vsel %vm151, %v738, %v731
    %v1114 = vrot.slane %v1108, 6
    %1115 = vrot.lane.b32.xlu0 %v1114, 64
    %v1116 = vpop.permute.xlu0 %1115
    %v1119 = vrot.slane %v1102, 4
    %v1121 = vsel %vm83, %v1111, %v1116
    %v1122 = vsel %vm85, %v1121, %v1119
    %v1123 = vld [vmem:[%s3 + $0x140] sm:$0xff]
    %v1124 = vld [vmem:[%s3 + $0x148] sm:$0xff]
    %v1125 = vld [vmem:[%s3 + $0x150] sm:$0xff]
    %v1126 = vld [vmem:[%s3 + $0x158] sm:$0xff]
    %v1128 = vsel %vm91, %v1122, 0
    %1130 = vmatpush.msra.mxu0 0.0
    %1131 = vmatpush.msra.mxu0 0.0
    %1132 = vmatpush.msra.mxu0 0.0
    %1133 = vmatpush.msra.mxu0 0.0
    %1134 = vmatpush.msra.mxu0 0.0
    %1135 = vmatpush.msra.mxu0 0.0
    %1136 = vmatpush.msra.mxu0 0.0
    %1137 = vmatpush.msra.mxu0 0.0
    %1138 = vmatpush.msra.mxu0 0.0
    %1139 = vmatpush.msra.mxu0 0.0
    %1140 = vmatpush.msra.mxu0 0.0
    %1141 = vmatpush.msra.mxu0 0.0
    %1142 = vmatpush.msra.mxu0 %v1126
    %1143 = vmatpush.msra.mxu0 %v1125
    %1144 = vmatpush.msra.mxu0 %v1124
    %1145 = vmatpush.msra.mxu0 %v1123
    %1146 = vmatmul.f32.gmra.mxu0 %v1128
    %v1147 = vpop.f32.mrf.mxu0
    %v1148 = vadd.f32 0.0, %v1147
    %1149 = vdwg.mxu0
    %v1151 = vrot.slane %v1148, 2
    %1152 = vrot.lane.b32.xlu0 %v1151, 96
    %v1153 = vpop.permute.xlu0 %1152
    %v1155 = vadd.f32 %v1148, %v1153
    %v1156 = vperm.slane %v42, 3
    %v1157 = vadd.f32 %v1155, %v1156
    %v1158 = vperm.slane %v42, 5
    %1160 = vrot.lane.b32.xlu0 %v1158, 64
    %v1161 = vpop.permute.xlu0 %1160
    %v1163 = vadd.f32 %v1148, %v1161
    %v1164 = vperm.slane %v42, 4
    %v1165 = vmul.f32 %v1157, %v1164
    %v1167 = vrot.slane %v1165, 1
    %v1168 = vperm.slane %v1165, 0
    %v1169 = vperm.slane %v1167, 0
    %v1172 = vmul.f32 %v1168, %v38
    %v1173 = vmul.f32 %v1169, %v39
    %v1174 = vsel %vm91, %v1172, 0.0
    %1175 = vadd.xlane.f32.xlu0 %v1174
    %v1176 = vpop.xlane.xlu0 %1175
    %v1177 = vsel %vm91, %v1173, 0.0
    %1178 = vadd.xlane.f32.xlu0 %v1177
    %v1179 = vpop.xlane.xlu0 %1178
    %v1182 = vperm.slane %v1176, %v148
    %v1183 = vperm.slane %v1179, %v148
    %v1184 = vsel %vm151, %v1183, %v1182
    %v1186 = vsel %vm154, %v1184, -inf
    %1187 = vmax.xlane.f32.xlu0 %v1186
    %v1188 = vpop.xlane.xlu0 %1187
    %v1190 = vperm.slane %v1188, 0
    %v1191 = vperm.slane %v1188, 1
    %v1194 = vsub.f32 %v1176, %v1190
    %v1195 = vsub.f32 %v1179, %v1191
    %v1196 = vmul.f32 %v1194, 1.442695
    %v1197 = vpow.pop %v1196
    %v1198 = vmul.f32 %v1195, 1.442695
    %v1199 = vpow.pop %v1198
    %1202 = vset.pattern.permute.xlu0 0
    %1203 = vperm.xlu0 %1202, %v1197
    %v1204 = vpop.permute.xlu0 %1203
    %1205 = vset.pattern.permute.xlu0 0
    %1206 = vperm.xlu0 %1205, %v1199
    %v1207 = vpop.permute.xlu0 %1206
    %v1208 = vperm.slane %v1204, %v148
    %v1209 = vperm.slane %v1207, %v148
    %v1210 = vsel %vm151, %v1209, %v1208
    %v1212 = vsel %vm154, %v1210, 0.0
    %1213 = vadd.xlane.f32.xlu0 %v1212
    %v1214 = vpop.xlane.xlu0 %1213
    %v1215 = vrcp.pop %v1214
    %v1217 = vperm.slane %v1215, 0
    %v1218 = vperm.slane %v1215, 1
    %v1221 = vmul.f32 %v1197, %v1217
    %v1222 = vmul.f32 %v1199, %v1218
    %1224 = vset.pattern.permute.xlu0 0
    %1225 = vperm.xlu0 %1224, %v1221
    %v1226 = vpop.permute.xlu0 %1225
    %1229 = vset.pattern.permute.xlu0 0
    %1230 = vperm.xlu0 %1229, %v1222
    %v1231 = vpop.permute.xlu0 %1230
    %v1233 = vmul.f32 %v1226, %v38
    %v1234 = vmul.f32 %v1231, %v39
    %v1235 = vsel %vm91, %v1233, 0.0
    %v1236 = vrot.slane %v1235, 4
    %v1237 = vadd.f32 %v1235, %v1236
    %v1238 = vrot.slane %v1237, 2
    %v1239 = vadd.f32 %v1237, %v1238
    %v1240 = vrot.slane %v1239, 1
    %v1241 = vadd.f32 %v1239, %v1240
    %v1242 = vsel %vm91, %v1234, 0.0
    %v1243 = vrot.slane %v1242, 4
    %v1244 = vadd.f32 %v1242, %v1243
    %v1245 = vrot.slane %v1244, 2
    %v1246 = vadd.f32 %v1244, %v1245
    %v1247 = vrot.slane %v1246, 1
    %v1248 = vadd.f32 %v1246, %v1247
    %v1249 = vperm.slane %v42, 6
    %v1250 = vmul.f32 %v1241, %v1249
    %v1251 = vmul.f32 %v1248, %v1249
    %v1252 = vld [vmem:[%s3 + $0x160] sm:$0xff]
    %v1253 = vld [vmem:[%s3 + $0x168] sm:$0xff]
    %v1254 = vld [vmem:[%s3 + $0x170] sm:$0xff]
    %v1255 = vld [vmem:[%s3 + $0x178] sm:$0xff]
    %v1258 = vrot.slane %v1251, 7
    %v1259 = vsel %vm151, %v1258, %v1250
    %v1260 = vsel %vm91, %v1259, 0
    %1262 = vmatpush.msra.mxu0 0.0
    %1263 = vmatpush.msra.mxu0 0.0
    %1264 = vmatpush.msra.mxu0 0.0
    %1265 = vmatpush.msra.mxu0 0.0
    %1266 = vmatpush.msra.mxu0 0.0
    %1267 = vmatpush.msra.mxu0 0.0
    %1268 = vmatpush.msra.mxu0 0.0
    %1269 = vmatpush.msra.mxu0 0.0
    %1270 = vmatpush.msra.mxu0 0.0
    %1271 = vmatpush.msra.mxu0 0.0
    %1272 = vmatpush.msra.mxu0 0.0
    %1273 = vmatpush.msra.mxu0 0.0
    %1274 = vmatpush.msra.mxu0 %v1255
    %1275 = vmatpush.msra.mxu0 %v1254
    %1276 = vmatpush.msra.mxu0 %v1253
    %1277 = vmatpush.msra.mxu0 %v1252
    %1278 = vmatmul.f32.gmra.mxu0 %v1260
    %v1279 = vpop.f32.mrf.mxu0
    %v1280 = vadd.f32 0.0, %v1279
    %1281 = vdwg.mxu0
    %v1283 = vrot.slane %v1280, 4
    %1284 = vrot.lane.b32.xlu0 %v1283, 64
    %v1285 = vpop.permute.xlu0 %1284
    %v1287 = vmul.f32 %v1163, %v1285
    %1288 = vrot.lane.b32.xlu0 %v1283, 32
    %v1289 = vpop.permute.xlu0 %1288
    %v1291 = vadd.f32 %v1287, %v1289
    %v1292 = vperm.slane %v1291, 4
    %v1293 = vlaneseq
    %v1294 = vshrl.u32 %v1293, 7
    %v1295 = vadd.s32 %v1294, 64
    %1296 = vset.pattern.permute.xlu0 %v1295
    %1297 = vperm.xlu0 %1296, %v1292
    %v1298 = vpop.permute.xlu0 %1297
    %v1299 = vlaneseq
    %v1300 = vshrl.u32 %v1299, 7
    %v1301 = vadd.s32 %v1300, 72
    %1302 = vset.pattern.permute.xlu0 %v1301
    %1303 = vperm.xlu0 %1302, %v1292
    %v1304 = vpop.permute.xlu0 %1303
    %v1305 = vlaneseq
    %v1306 = vshrl.u32 %v1305, 7
    %v1307 = vadd.s32 %v1306, 80
    %1308 = vset.pattern.permute.xlu0 %v1307
    %1309 = vperm.xlu0 %1308, %v1292
    %v1310 = vpop.permute.xlu0 %1309
    %v1311 = vlaneseq
    %v1312 = vshrl.u32 %v1311, 7
    %v1313 = vadd.s32 %v1312, 88
    %1314 = vset.pattern.permute.xlu0 %v1313
    %1315 = vperm.xlu0 %1314, %v1292
    %v1316 = vpop.permute.xlu0 %1315
    %v1317 = vperm.slane %v1291, 5
    %v1318 = vlaneseq
    %v1319 = vshrl.u32 %v1318, 7
    %v1320 = vadd.s32 %v1319, 64
    %1321 = vset.pattern.permute.xlu0 %v1320
    %1322 = vperm.xlu0 %1321, %v1317
    %v1323 = vpop.permute.xlu0 %1322
    %v1324 = vlaneseq
    %v1325 = vshrl.u32 %v1324, 7
    %v1326 = vadd.s32 %v1325, 72
    %1327 = vset.pattern.permute.xlu0 %v1326
    %1328 = vperm.xlu0 %1327, %v1317
    %v1329 = vpop.permute.xlu0 %1328
    %v1330 = vlaneseq
    %v1331 = vshrl.u32 %v1330, 7
    %v1332 = vadd.s32 %v1331, 80
    %1333 = vset.pattern.permute.xlu0 %v1332
    %1334 = vperm.xlu0 %1333, %v1317
    %v1335 = vpop.permute.xlu0 %1334
    %v1336 = vlaneseq
    %v1337 = vshrl.u32 %v1336, 7
    %v1338 = vadd.s32 %v1337, 88
    %1339 = vset.pattern.permute.xlu0 %v1338
    %1340 = vperm.xlu0 %1339, %v1317
    %v1341 = vpop.permute.xlu0 %1340
    %v1342 = vmul.f32 %v1298, %v22
    %v1343 = vmul.f32 %v1298, %v23
    %v1344 = vmul.f32 %v1304, %v24
    %v1345 = vmul.f32 %v1304, %v25
    %v1346 = vmul.f32 %v1310, %v26
    %v1347 = vmul.f32 %v1310, %v27
    %v1348 = vmul.f32 %v1316, %v28
    %v1349 = vmul.f32 %v1316, %v29
    %v1350 = vmul.f32 %v1323, %v30
    %v1351 = vmul.f32 %v1323, %v31
    %v1352 = vmul.f32 %v1329, %v32
    %v1353 = vmul.f32 %v1329, %v33
    %v1354 = vmul.f32 %v1335, %v34
    %v1355 = vmul.f32 %v1335, %v35
    %v1356 = vmul.f32 %v1341, %v36
    %v1357 = vmul.f32 %v1341, %v37
    %v1358 = vadd.f32 %v1342, %v1344
    %v1359 = vadd.f32 %v1358, %v1346
    %v1360 = vadd.f32 %v1359, %v1348
    %v1361 = vrot.slane %v1360, 4
    %v1362 = vadd.f32 %v1360, %v1361
    %v1363 = vrot.slane %v1362, 2
    %v1364 = vadd.f32 %v1362, %v1363
    %v1365 = vrot.slane %v1364, 1
    %v1366 = vadd.f32 %v1364, %v1365
    %v1367 = vsel %vm336, %v1343, 0.0
    %v1368 = vsel %vm336, %v1345, 0.0
    %v1369 = vadd.f32 %v1367, %v1368
    %v1370 = vsel %vm336, %v1347, 0.0
    %v1371 = vadd.f32 %v1369, %v1370
    %v1372 = vsel %vm336, %v1349, 0.0
    %v1373 = vadd.f32 %v1371, %v1372
    %v1374 = vrot.slane %v1373, 4
    %v1375 = vadd.f32 %v1373, %v1374
    %v1376 = vrot.slane %v1375, 2
    %v1377 = vadd.f32 %v1375, %v1376
    %v1378 = vrot.slane %v1377, 1
    %v1379 = vadd.f32 %v1377, %v1378
    %v1380 = vadd.f32 %v1350, %v1352
    %v1381 = vadd.f32 %v1380, %v1354
    %v1382 = vadd.f32 %v1381, %v1356
    %v1383 = vrot.slane %v1382, 4
    %v1384 = vadd.f32 %v1382, %v1383
    %v1385 = vrot.slane %v1384, 2
    %v1386 = vadd.f32 %v1384, %v1385
    %v1387 = vrot.slane %v1386, 1
    %v1388 = vadd.f32 %v1386, %v1387
    %v1389 = vsel %vm336, %v1351, 0.0
    %v1390 = vsel %vm336, %v1353, 0.0
    %v1391 = vadd.f32 %v1389, %v1390
    %v1392 = vsel %vm336, %v1355, 0.0
    %v1393 = vadd.f32 %v1391, %v1392
    %v1394 = vsel %vm336, %v1357, 0.0
    %v1395 = vadd.f32 %v1393, %v1394
    %v1396 = vrot.slane %v1395, 4
    %v1397 = vadd.f32 %v1395, %v1396
    %v1398 = vrot.slane %v1397, 2
    %v1399 = vadd.f32 %v1397, %v1398
    %v1400 = vrot.slane %v1399, 1
    %v1401 = vadd.f32 %v1399, %v1400
    %v1406 = vsel %vm151, %v1388, %v1366
    %v1407 = vsel %vm151, %v1401, %v1379
    %v1410 = vsel %vm83, %v1406, -inf
    %v1411 = vsel %vm381, %v1407, -inf
    %v1412 = vmax.f32 %v1410, %v1411
    %1413 = vmax.xlane.f32.xlu0 %v1412
    %v1414 = vpop.xlane.xlu0 %1413
    %v1416 = vrot.slane %v1414, 1
    %v1419 = vsub.f32 %v1366, %v1414
    %v1420 = vsub.f32 %v1379, %v1414
    %v1421 = vsub.f32 %v1388, %v1416
    %v1422 = vsub.f32 %v1401, %v1416
    %v1423 = vmul.f32 %v1419, 1.442695
    %v1424 = vpow.pop %v1423
    %v1425 = vmul.f32 %v1420, 1.442695
    %v1426 = vpow.pop %v1425
    %v1427 = vmul.f32 %v1421, 1.442695
    %v1428 = vpow.pop %v1427
    %v1429 = vmul.f32 %v1422, 1.442695
    %v1430 = vpow.pop %v1429
    %v1435 = vrot.slane %v1428, 7
    %v1436 = vsel %vm151, %v1435, %v1424
    %v1437 = vrot.slane %v1430, 7
    %v1438 = vsel %vm151, %v1437, %v1426
    %v1441 = vsel %vm83, %v1436, 0.0
    %v1442 = vsel %vm381, %v1438, 0.0
    %v1443 = vadd.f32 %v1441, %v1442
    %1444 = vadd.xlane.f32.xlu0 %v1443
    %v1445 = vpop.xlane.xlu0 %1444
    %v1446 = vrcp.pop %v1445
    %v1448 = vrot.slane %v1446, 1
    %v1451 = vmul.f32 %v1424, %v1446
    %v1452 = vmul.f32 %v1426, %v1446
    %v1453 = vmul.f32 %v1428, %v1448
    %v1454 = vmul.f32 %v1430, %v1448
    %v1455 = vperm.slane %v1451, 0
    %v1456 = vperm.slane %v1452, 0
    %v1457 = vperm.slane %v1453, 0
    %v1458 = vperm.slane %v1454, 0
    %v1459 = vmul.f32 %v1455, %v22
    %v1460 = vmul.f32 %v1456, %v23
    %v1461 = vmul.f32 %v1455, %v24
    %v1462 = vmul.f32 %v1456, %v25
    %v1463 = vmul.f32 %v1455, %v26
    %v1464 = vmul.f32 %v1456, %v27
    %v1465 = vmul.f32 %v1455, %v28
    %v1466 = vmul.f32 %v1456, %v29
    %v1467 = vmul.f32 %v1457, %v30
    %v1468 = vmul.f32 %v1458, %v31
    %v1469 = vmul.f32 %v1457, %v32
    %v1470 = vmul.f32 %v1458, %v33
    %v1471 = vmul.f32 %v1457, %v34
    %v1472 = vmul.f32 %v1458, %v35
    %v1473 = vmul.f32 %v1457, %v36
    %v1474 = vmul.f32 %v1458, %v37
    %v1475 = vsel %vm336, %v1460, 0.0
    %v1476 = vadd.f32 %v1459, %v1475
    %1477 = vadd.xlane.f32.xlu0 %v1476
    %v1478 = vpop.xlane.xlu0 %1477
    %v1479 = vsel %vm336, %v1462, 0.0
    %v1480 = vadd.f32 %v1461, %v1479
    %1481 = vadd.xlane.f32.xlu0 %v1480
    %v1482 = vpop.xlane.xlu0 %1481
    %v1483 = vsel %vm336, %v1464, 0.0
    %v1484 = vadd.f32 %v1463, %v1483
    %1485 = vadd.xlane.f32.xlu0 %v1484
    %v1486 = vpop.xlane.xlu0 %1485
    %v1487 = vsel %vm336, %v1466, 0.0
    %v1488 = vadd.f32 %v1465, %v1487
    %1489 = vadd.xlane.f32.xlu0 %v1488
    %v1490 = vpop.xlane.xlu0 %1489
    %v1491 = vsel %vm336, %v1468, 0.0
    %v1492 = vadd.f32 %v1467, %v1491
    %1493 = vadd.xlane.f32.xlu0 %v1492
    %v1494 = vpop.xlane.xlu0 %1493
    %v1495 = vsel %vm336, %v1470, 0.0
    %v1496 = vadd.f32 %v1469, %v1495
    %1497 = vadd.xlane.f32.xlu0 %v1496
    %v1498 = vpop.xlane.xlu0 %1497
    %v1499 = vsel %vm336, %v1472, 0.0
    %v1500 = vadd.f32 %v1471, %v1499
    %1501 = vadd.xlane.f32.xlu0 %v1500
    %v1502 = vpop.xlane.xlu0 %1501
    %v1503 = vsel %vm336, %v1474, 0.0
    %v1504 = vadd.f32 %v1473, %v1503
    %1505 = vadd.xlane.f32.xlu0 %v1504
    %v1506 = vpop.xlane.xlu0 %1505
    %v1515 = vperm.slane %v1478, %v148
    %v1516 = vperm.slane %v1482, %v487
    %v1517 = vsel %vm489, %v1516, %v1515
    %v1518 = vperm.slane %v1486, %v491
    %v1519 = vsel %vm493, %v1518, %v1517
    %v1520 = vperm.slane %v1490, %v495
    %v1521 = vsel %vm497, %v1520, %v1519
    %v1522 = vperm.slane %v1494, %v148
    %v1523 = vperm.slane %v1498, %v487
    %v1524 = vsel %vm489, %v1523, %v1522
    %v1525 = vperm.slane %v1502, %v491
    %v1526 = vsel %vm493, %v1525, %v1524
    %v1527 = vperm.slane %v1506, %v495
    %v1528 = vsel %vm497, %v1527, %v1526
    %v1529 = vsel %vm151, %v1528, %v1521
    %1531 = vrot.lane.b32.xlu0 %v1102, 32
    %v1532 = vpop.permute.xlu0 %1531
    %v1534 = vsel %vm91, %v1529, %v1532
    %v1535 = vld [vmem:[%s3 + $0x180] sm:$0xff]
    %v1536 = vld [vmem:[%s3 + $0x188] sm:$0xff]
    %v1537 = vld [vmem:[%s3 + $0x190] sm:$0xff]
    %v1538 = vld [vmem:[%s3 + $0x198] sm:$0xff]
    %v1539 = vld [vmem:[%s3 + $0x1a0] sm:$0xff]
    %v1540 = vld [vmem:[%s3 + $0x1a8] sm:$0xff]
    %v1541 = vld [vmem:[%s3 + $0x1b0] sm:$0xff]
    %v1542 = vld [vmem:[%s3 + $0x1b8] sm:$0xff]
    %v1544 = vsel %vm54, %v1534, 0
    %1546 = vmatpush.msra.mxu0 0.0
    %1547 = vmatpush.msra.mxu0 0.0
    %1548 = vmatpush.msra.mxu0 0.0
    %1549 = vmatpush.msra.mxu0 0.0
    %1550 = vmatpush.msra.mxu0 0.0
    %1551 = vmatpush.msra.mxu0 0.0
    %1552 = vmatpush.msra.mxu0 0.0
    %1553 = vmatpush.msra.mxu0 0.0
    %1554 = vmatpush.msra.mxu0 %v1542
    %1555 = vmatpush.msra.mxu0 %v1541
    %1556 = vmatpush.msra.mxu0 %v1540
    %1557 = vmatpush.msra.mxu0 %v1539
    %1558 = vmatpush.msra.mxu0 %v1538
    %1559 = vmatpush.msra.mxu0 %v1537
    %1560 = vmatpush.msra.mxu0 %v1536
    %1561 = vmatpush.msra.mxu0 %v1535
    %1562 = vmatmul.f32.gmra.mxu0 %v1544
    %v1563 = vpop.f32.mrf.mxu0
    %v1564 = vadd.f32 0.0, %v1563
    %1565 = vdwg.mxu0
    %v1566 = vperm.slane %v42, 7
    %v1567 = vadd.f32 %v1564, %v1566
    %v1568 = vperm.slane %v43, 0
    %v1569 = vmul.f32 %v1241, %v1568
    %v1570 = vmul.f32 %v1248, %v1568
    %v1573 = vrot.slane %v1570, 7
    %v1574 = vsel %vm151, %v1573, %v1569
    %v1576 = vsel %vm554, %v1574, 0.0
    %1577 = vadd.xlane.f32.xlu0 %v1576
    %v1578 = vpop.xlane.xlu0 %1577
    %v1579 = vadd.f32 %v1578, %v558
    %v1580 = vxor.u32 %v1579, 2147483648
    %v1581 = vmul.f32 %v1580, 1.442695
    %v1582 = vpow.pop %v1581
    %v1583 = vadd.f32 %v1582, 1.0
    %v1584 = vrcp.pop %v1583
    %v1585 = vmul.f32 %v1583, %v1584
    %v1586 = vsub.f32 1.0, %v1585
    %v1587 = vmul.f32 %v1584, %v1586
    %v1588 = vadd.f32 %v1584, %v1587
    %vm1589 = vweird.f32 %v1583
    %vm1590 = vweird.f32 %v1584
    %vm1591 = vmor %vm1589, %vm1590
    %v1592 = vsel %vm1591, %v1584, %v1588
    %v1593 = vand.u32 2147483647, %v1583
    %vm1594 = vcmp.eq.f32.partialorder %v1593, 8.507059e+37
    %v1595 = vand.u32 %v1583, 2147483648
    %v1596 = vor.u32 1.1754944e-38, %v1595
    %v1597 = vsel %vm1594, %v1596, %v1592
    %v1598 = vmul.f32 1.0, %v1597
    %1600 = vset.pattern.permute.xlu0 3
    %1601 = vperm.xlu0 %1600, %v1598
    %v1602 = vpop.permute.xlu0 %1601
    %v1604 = vmul.f32 %v1102, %v1602
    %v1605 = vsub.f32 1.0, %v1598
    %1607 = vset.pattern.permute.xlu0 3
    %1608 = vperm.xlu0 %1607, %v1605
    %v1609 = vpop.permute.xlu0 %1608
    %v1611 = vmul.f32 %v1567, %v1609
    %v1612 = vadd.f32 %v1604, %v1611
    %1614 = vrot.lane.b32.xlu0 %v1612, 64
    %v1615 = vpop.permute.xlu0 %1614
    %v1617 = vsel %vm54, %v21, %v1615
    %v1618 = vld [vmem:[%s3 + $0x1c0] sm:$0xff]
    %v1619 = vld [vmem:[%s3 + $0x1c8] sm:$0xff]
    %v1620 = vld [vmem:[%s3 + $0x1d0] sm:$0xff]
    %v1621 = vld [vmem:[%s3 + $0x1d8] sm:$0xff]
    %v1622 = vld [vmem:[%s3 + $0x1e0] sm:$0xff]
    %v1623 = vld [vmem:[%s3 + $0x1e8] sm:$0xff]
    %v1624 = vld [vmem:[%s3 + $0x1f0] sm:$0xff]
    %v1625 = vld [vmem:[%s3 + $0x1f8] sm:$0xff]
    %v1626 = vld [vmem:[%s3 + $0x200] sm:$0xff]
    %v1627 = vld [vmem:[%s3 + $0x208] sm:$0xff]
    %v1628 = vld [vmem:[%s3 + $0x210] sm:$0xff]
    %v1629 = vld [vmem:[%s3 + $0x218] sm:$0xff]
    %v1630 = vperm.slane %v40, 2
    %vm1631 = vcmask 785408
    %v1633 = vsel %vm1631, %v1617, 0
    %1635 = vmatpush.msra.mxu0 0.0
    %1636 = vmatpush.msra.mxu0 0.0
    %1637 = vmatpush.msra.mxu0 0.0
    %1638 = vmatpush.msra.mxu0 0.0
    %1639 = vmatpush.msra.mxu0 %v1629
    %1640 = vmatpush.msra.mxu0 %v1628
    %1641 = vmatpush.msra.mxu0 %v1627
    %1642 = vmatpush.msra.mxu0 %v1626
    %1643 = vmatpush.msra.mxu0 %v1625
    %1644 = vmatpush.msra.mxu0 %v1624
    %1645 = vmatpush.msra.mxu0 %v1623
    %1646 = vmatpush.msra.mxu0 %v1622
    %1647 = vmatpush.msra.mxu0 %v1621
    %1648 = vmatpush.msra.mxu0 %v1620
    %1649 = vmatpush.msra.mxu0 %v1619
    %1650 = vmatpush.msra.mxu0 %v1618
    %1651 = vmatmul.f32.gmra.mxu0 %v1633
    %v1652 = vpop.f32.mrf.mxu0
    %v1653 = vadd.f32 %v1630, %v1652
    %1654 = vdwg.mxu0
    %vm1655 = vcmp.ge.f32.partialorder %v1653, 0.0
    %v1657 = vrot.slane %v43, 1
    %s1658 = vtos %v1657
    %v1659 = vstv %s1658
    %v1661 = vmul.f32 %v1659, %v1653
    %v1662 = vsel %vm1655, %v1653, %v1661
    %v1663 = vld [vmem:[%s3 + $0x220] sm:$0xff]
    %v1664 = vld [vmem:[%s3 + $0x228] sm:$0xff]
    %v1665 = vld [vmem:[%s3 + $0x230] sm:$0xff]
    %v1666 = vld [vmem:[%s3 + $0x238] sm:$0xff]
    %v1667 = vld [vmem:[%s3 + $0x240] sm:$0xff]
    %v1668 = vld [vmem:[%s3 + $0x248] sm:$0xff]
    %v1669 = vld [vmem:[%s3 + $0x250] sm:$0xff]
    %v1670 = vld [vmem:[%s3 + $0x258] sm:$0xff]
    %v1671 = vld [vmem:[%s3 + $0x260] sm:$0xff]
    %v1672 = vld [vmem:[%s3 + $0x268] sm:$0xff]
    %v1673 = vld [vmem:[%s3 + $0x270] sm:$0xff]
    %v1674 = vld [vmem:[%s3 + $0x278] sm:$0xff]
    %v1675 = vld [vmem:[%s3 + $0x280] sm:$0xff]
    %v1676 = vld [vmem:[%s3 + $0x288] sm:$0xff]
    %v1677 = vld [vmem:[%s3 + $0x290] sm:$0xff]
    %v1678 = vld [vmem:[%s3 + $0x298] sm:$0xff]
    %v1679 = vperm.slane %v40, 3
    %1680 = vmatpush.msra.mxu0 %v1678
    %1681 = vmatpush.msra.mxu0 %v1677
    %1682 = vmatpush.msra.mxu0 %v1676
    %1683 = vmatpush.msra.mxu0 %v1675
    %1684 = vmatpush.msra.mxu0 %v1674
    %1685 = vmatpush.msra.mxu0 %v1673
    %1686 = vmatpush.msra.mxu0 %v1672
    %1687 = vmatpush.msra.mxu0 %v1671
    %1688 = vmatpush.msra.mxu0 %v1670
    %1689 = vmatpush.msra.mxu0 %v1669
    %1690 = vmatpush.msra.mxu0 %v1668
    %1691 = vmatpush.msra.mxu0 %v1667
    %1692 = vmatpush.msra.mxu0 %v1666
    %1693 = vmatpush.msra.mxu0 %v1665
    %1694 = vmatpush.msra.mxu0 %v1664
    %1695 = vmatpush.msra.mxu0 %v1663
    %1696 = vmatmul.f32.gmra.mxu0 %v1662
    %v1697 = vpop.f32.mrf.mxu0
    %v1698 = vadd.f32 %v1679, %v1697
    %1699 = vdwg.mxu0
    %1700 = vst [vmem:[#allocation2] sm:$0x3] %v1698
    // Predicated region
    $region22: #{mac_forward.1} parent=1 // pred_check
      _
    $region23: #{mac_forward.1} parent=1 // pred_check_branch
      %1702 = sbr.rel (0) target = $region25
    $region24: #{mac_forward.1} parent=1 // pred_region
      %1704 = vsyncadd [#allocation3], 0
      %s1706 = sshll.u32 [#allocation2], 4
      %s1707 = int_to_ptr.vmem [resolvable:$true] %s1706
      %s1708 = sshll.u32 %s5, 4
      %s1709 = int_to_ptr.hbm [resolvable:$true] %s1708
      %1711 = dma.vmem_to_hbm [thread:$0]  %s1707, 32, %s1709, [#allocation3]
    $region25: #{mac_forward.1} parent=1 // pred_fallthru
      _
    // Predicated region
    $region26: #{mac_forward.1} parent=1 // pred_check
      _
    $region27: #{mac_forward.1} parent=1 // pred_check_branch
      %1713 = sbr.rel (0) target = $region29
    $region28: #{mac_forward.1} parent=1 // pred_region
      %1715 = dma.done [#allocation3], 32
    $region29: #{mac_forward.1} parent=1 // pred_fallthru
      _
    %1716 = vsyncpa [#allocation3], 1

</llo_original>
